<compile_context>
chip_gen: v5e
topology: v5e:2x2
jax: 0.10.0
libtpu: 0.0.40
codegen_flags: <defaults>
</compile_context>

<pallas_src>
import functools

import jax
import jax.numpy as jnp
from jax.experimental import pallas as pl
from jax.experimental.pallas import tpu as pltpu

_LEAKY_SLOPE = 0.2
_LANE = 128
_SUBLANE_BF16 = 16          # bf16 packs 16 rows per vreg
_MAX_TILE = 1024            # streamed-axis tile (multiple of 128)
_FUSE_BUDGET = 24 * 1024 * 1024   # resident-operand budget for the fused path
_VMEM_CAP = 32 * 1024 * 1024      # hard cap (v7x-safe: 64 MiB physical / TC)


def _round_up(x, m):
    return ((x + m - 1) // m) * m


def _leaky_relu(v, slope=_LEAKY_SLOPE):
    return jnp.where(v > 0, v, slope * v)


def _z_col_offset(z_dims):
    # Lane-align the [w_pri | w_mod_x] split only when z_dims is big enough
    # that alignment is free; at tiny z_dims keep the packing compact.
    return z_dims if z_dims < _LANE else _round_up(z_dims, _LANE)


# ----------------------------------------------------------------------------
# Fused single-call kernel (small D): everything resident, one grid step.
# ----------------------------------------------------------------------------
def _fused_kernel(
    x_ref,       # [B_pad, D_pad]       bf16
    wcat_ref,    # [D_pad, ZH_pad]      bf16   fused [w_pri | w_mod_x]
    wmz_ref,     # [Z, HID]             bf16
    wws_ref,     # [HID, NWZ_pad]       bf16
    bpri_ref,    # [1, Z]               f32
    bmod_ref,    # [1, HID]             f32
    bws_ref,     # [1, NWZ_pad]         f32
    wg_ref,      # [NWZ_pad, D_pad]     bf16
    bg_ref,      # [1, D_pad]           f32
    out_ref,     # [B_pad, D_pad]       f32
    ws_ref,      # [B_pad, NWZ_pad]     f32
    *,
    z_dims,
    hidden,
    z_off,
):
    # Fused D-contraction: x @ [w_pri | w_mod_x]
    acc = jnp.dot(x_ref[...], wcat_ref[...], preferred_element_type=jnp.float32)
    # e_pri: z = leaky(x @ w_pri + b_pri)
    z = _leaky_relu(acc[:, :z_dims] + bpri_ref[...])
    # e_mod hidden: h = leaky(x @ w_mod_x + z @ w_mod_z + b_mod)
    h = _leaky_relu(
        acc[:, z_off:z_off + hidden]
        + jnp.dot(z.astype(wmz_ref.dtype), wmz_ref[...],
                  preferred_element_type=jnp.float32)
        + bmod_ref[...]
    )
    # modspace: ws = h @ w_ws + b_ws
    ws = (
        jnp.dot(h.astype(wws_ref.dtype), wws_ref[...],
                preferred_element_type=jnp.float32)
        + bws_ref[...]
    )
    ws_ref[...] = ws
    # generator: y = tanh(ws @ w_g + b_g)   (ws stays in VMEM, no HBM round-trip)
    y = jnp.dot(ws.astype(wg_ref.dtype), wg_ref[...],
                preferred_element_type=jnp.float32)
    out_ref[...] = jnp.tanh(y + bg_ref[...])


# ----------------------------------------------------------------------------
# Tiled path, phase 1: encoder K-reduction over D  ->  ws (f32 + bf16)
# ----------------------------------------------------------------------------
def _encoder_kernel(
    x_ref,        # [B_pad, tk]        bf16   (K tile of the flattened image)
    wcat_ref,     # [tk, ZH_pad]       bf16
    wmz_ref,      # [Z, HID]           bf16   (resident)
    wws_ref,      # [HID, NWZ_pad]     bf16   (resident)
    bpri_ref,     # [1, Z]             f32
    bmod_ref,     # [1, HID]           f32
    bws_ref,      # [1, NWZ_pad]       f32
    ws_f32_ref,   # [B_pad, NWZ_pad]   f32    (output, resident across grid)
    ws_bf16_ref,  # [B_pad, NWZ_pad]   bf16   (output, feeds phase 2 directly)
    acc_ref,      # [B_pad, ZH_pad]    f32    (VMEM scratch accumulator)
    *,
    z_dims,
    hidden,
    z_off,
):
    k = pl.program_id(0)

    @pl.when(k == 0)
    def _():
        acc_ref[...] = jnp.zeros_like(acc_ref)

    acc_ref[...] += jnp.dot(
        x_ref[...], wcat_ref[...], preferred_element_type=jnp.float32
    )

    @pl.when(k == pl.num_programs(0) - 1)
    def _():
        acc = acc_ref[...]
        z = _leaky_relu(acc[:, :z_dims] + bpri_ref[...])
        h = _leaky_relu(
            acc[:, z_off:z_off + hidden]
            + jnp.dot(z.astype(wmz_ref.dtype), wmz_ref[...],
                      preferred_element_type=jnp.float32)
            + bmod_ref[...]
        )
        ws = (
            jnp.dot(h.astype(wws_ref.dtype), wws_ref[...],
                    preferred_element_type=jnp.float32)
            + bws_ref[...]
        )
        ws_f32_ref[...] = ws
        ws_bf16_ref[...] = ws.astype(jnp.bfloat16)


# ----------------------------------------------------------------------------
# Tiled path, phase 2: generator N-tiled expansion over D
# ----------------------------------------------------------------------------
def _generator_kernel(
    ws_ref,      # [B_pad, NWZ_pad]  bf16  (resident)
    wg_ref,      # [NWZ_pad, tn]     bf16  (streamed column panel)
    bg_ref,      # [1, tn]           f32
    out_ref,     # [B_pad, tn]       f32
):
    y = jnp.dot(ws_ref[...], wg_ref[...], preferred_element_type=jnp.float32)
    out_ref[...] = jnp.tanh(y + bg_ref[...])


# ----------------------------------------------------------------------------
# Parameter packing (done once, outside the hot path).
# ----------------------------------------------------------------------------
def pack_params(params):
    D, Z = params["w_pri"].shape
    HID = params["w_mod_x"].shape[1]
    NWZ = params["w_ws"].shape[1]

    z_off = _z_col_offset(Z)
    ZH = z_off + HID
    ZH_pad = _round_up(ZH, _LANE)
    NWZ_pad = _round_up(NWZ, _LANE)
    tile = min(_MAX_TILE, _round_up(D, _LANE))
    D_pad = _round_up(D, tile)

    # Fused [w_pri | w_mod_x] -> [D_pad, ZH_pad] bf16 (zero padding is exact).
    w_cat = jnp.zeros((D_pad, ZH_pad), jnp.bfloat16)
    w_cat = w_cat.at[:D, :Z].set(params["w_pri"].astype(jnp.bfloat16))
    w_cat = w_cat.at[:D, z_off:z_off + HID].set(params["w_mod_x"].astype(jnp.bfloat16))

    w_ws = jnp.zeros((HID, NWZ_pad), jnp.bfloat16)
    w_ws = w_ws.at[:, :NWZ].set(params["w_ws"].astype(jnp.bfloat16))
    b_ws = jnp.zeros((1, NWZ_pad), jnp.float32)
    b_ws = b_ws.at[:, :NWZ].set(params["b_ws"].astype(jnp.float32))

    w_g = jnp.zeros((NWZ_pad, D_pad), jnp.bfloat16)
    w_g = w_g.at[:NWZ, :D].set(params["w_g"].astype(jnp.bfloat16))
    b_g = jnp.zeros((1, D_pad), jnp.float32)
    b_g = b_g.at[:, :D].set(params["b_g"].astype(jnp.float32))

    return {
        "w_cat": w_cat,
        "w_mod_z": params["w_mod_z"].astype(jnp.bfloat16),
        "w_ws": w_ws,
        "b_pri": params["b_pri"].astype(jnp.float32),
        "b_mod": params["b_mod"].astype(jnp.float32),
        "b_ws": b_ws,
        "w_g": w_g,
        "b_g": b_g,
    }


# ----------------------------------------------------------------------------
# Forward wrapper
# ----------------------------------------------------------------------------
def modspace_autoencoder_forward(x_nchw, packed, *, num_ws):
    """x_nchw: [B, C, H, W] f32. Returns (output [B,C,H,W] f32, ws [B,num_ws,z_dims] f32)."""
    B, C, H, W = x_nchw.shape
    D = C * H * W

    Z, HID = packed["w_mod_z"].shape
    NWZ_pad = packed["w_ws"].shape[1]
    NWZ = num_ws * Z
    z_off = _z_col_offset(Z)
    D_pad, ZH_pad = packed["w_cat"].shape

    # Batch padded to 16 sublanes (bf16 LHS packing); D zero-padded (exact).
    B_pad = _round_up(max(B, _SUBLANE_BF16), _SUBLANE_BF16)

    x_flat = x_nchw.reshape(B, D)
    x_p = jnp.zeros((B_pad, D_pad), jnp.bfloat16)
    x_p = x_p.at[:B, :D].set(x_flat.astype(jnp.bfloat16))

    small_bytes = (
        Z * HID * 2 + HID * NWZ_pad * 2
        + (Z + HID + NWZ_pad + D_pad) * 4
    )
    operand_bytes = (
        B_pad * D_pad * 2            # x
        + D_pad * ZH_pad * 2         # w_cat
        + NWZ_pad * D_pad * 2        # w_g
        + small_bytes
        + B_pad * D_pad * 4          # out
        + B_pad * NWZ_pad * 4        # ws
    )

    if 2 * operand_bytes <= _FUSE_BUDGET:
        # ------------------- fused single-call path (small D) -------------------
        fused_vmem = int(min(max(2 * operand_bytes + (2 << 20), 8 << 20), _VMEM_CAP))

        out_pad, ws_pad = pl.pallas_call(
            functools.partial(_fused_kernel, z_dims=Z, hidden=HID, z_off=z_off),
            out_shape=(
                jax.ShapeDtypeStruct((B_pad, D_pad), jnp.float32),
                jax.ShapeDtypeStruct((B_pad, NWZ_pad), jnp.float32),
            ),
            grid_spec=pltpu.PrefetchScalarGridSpec(
                num_scalar_prefetch=0,
                grid=(1,),
                in_specs=[
                    pl.BlockSpec((B_pad, D_pad), lambda i: (0, 0)),
                    pl.BlockSpec((D_pad, ZH_pad), lambda i: (0, 0)),
                    pl.BlockSpec((Z, HID), lambda i: (0, 0)),
                    pl.BlockSpec((HID, NWZ_pad), lambda i: (0, 0)),
                    pl.BlockSpec((1, Z), lambda i: (0, 0)),
                    pl.BlockSpec((1, HID), lambda i: (0, 0)),
                    pl.BlockSpec((1, NWZ_pad), lambda i: (0, 0)),
                    pl.BlockSpec((NWZ_pad, D_pad), lambda i: (0, 0)),
                    pl.BlockSpec((1, D_pad), lambda i: (0, 0)),
                ],
                out_specs=[
                    pl.BlockSpec((B_pad, D_pad), lambda i: (0, 0)),
                    pl.BlockSpec((B_pad, NWZ_pad), lambda i: (0, 0)),
                ],
            ),
            compiler_params=pltpu.CompilerParams(
                dimension_semantics=("arbitrary",),
                vmem_limit_bytes=fused_vmem,
            ),
            cost_estimate=pl.CostEstimate(
                flops=2 * B_pad * (D_pad * ZH_pad + Z * HID + HID * NWZ_pad
                                   + NWZ_pad * D_pad),
                transcendentals=B_pad * D_pad,
                bytes_accessed=int(operand_bytes),
            ),
        )(
            x_p,
            packed["w_cat"], packed["w_mod_z"], packed["w_ws"],
            packed["b_pri"], packed["b_mod"], packed["b_ws"],
            packed["w_g"], packed["b_g"],
        )
    else:
        # ------------------- tiled two-phase path (large D) ---------------------
        tile = min(_MAX_TILE, D_pad)          # divides D_pad by construction
        grid_steps = D_pad // tile

        # Phase 1: encoder (K-reduction over D).
        enc_tiles = B_pad * tile * 2 + tile * ZH_pad * 2
        enc_out = B_pad * NWZ_pad * (4 + 2)
        enc_acc = B_pad * ZH_pad * 4
        enc_need = 2 * enc_tiles + 2 * small_bytes + 2 * enc_out + enc_acc
        enc_vmem = int(min(max(int(1.25 * enc_need), 4 << 20), _VMEM_CAP))

        ws_pad, ws_bf16 = pl.pallas_call(
            functools.partial(_encoder_kernel, z_dims=Z, hidden=HID, z_off=z_off),
            out_shape=(
                jax.ShapeDtypeStruct((B_pad, NWZ_pad), jnp.float32),
                jax.ShapeDtypeStruct((B_pad, NWZ_pad), jnp.bfloat16),
            ),
            grid_spec=pltpu.PrefetchScalarGridSpec(
                num_scalar_prefetch=0,
                grid=(grid_steps,),
                in_specs=[
                    pl.BlockSpec((B_pad, tile), lambda k: (0, k)),     # x (K tile)
                    pl.BlockSpec((tile, ZH_pad), lambda k: (k, 0)),    # fused weight
                    pl.BlockSpec((Z, HID), lambda k: (0, 0)),          # w_mod_z
                    pl.BlockSpec((HID, NWZ_pad), lambda k: (0, 0)),    # w_ws
                    pl.BlockSpec((1, Z), lambda k: (0, 0)),            # b_pri
                    pl.BlockSpec((1, HID), lambda k: (0, 0)),          # b_mod
                    pl.BlockSpec((1, NWZ_pad), lambda k: (0, 0)),      # b_ws
                ],
                out_specs=[
                    pl.BlockSpec((B_pad, NWZ_pad), lambda k: (0, 0)),
                    pl.BlockSpec((B_pad, NWZ_pad), lambda k: (0, 0)),
                ],
                scratch_shapes=[pltpu.VMEM((B_pad, ZH_pad), jnp.float32)],
            ),
            compiler_params=pltpu.CompilerParams(
                dimension_semantics=("arbitrary",),
                vmem_limit_bytes=enc_vmem,
            ),
            cost_estimate=pl.CostEstimate(
                flops=2 * B_pad * (D_pad * ZH_pad + Z * HID + HID * NWZ_pad),
                transcendentals=0,
                bytes_accessed=int(
                    B_pad * D_pad * 2 + D_pad * ZH_pad * 2 + small_bytes
                    + B_pad * NWZ_pad * 6
                ),
            ),
        )(
            x_p,
            packed["w_cat"], packed["w_mod_z"], packed["w_ws"],
            packed["b_pri"], packed["b_mod"], packed["b_ws"],
        )

        # Phase 2: generator (N-tiled expansion over D), ws consumed as bf16
        # directly from the encoder output (no wrapper-side convert).
        gen_tiles = NWZ_pad * tile * 2 + tile * 4 + B_pad * tile * 4
        gen_need = 2 * gen_tiles + 2 * B_pad * NWZ_pad * 2
        gen_vmem = int(min(max(int(1.25 * gen_need), 4 << 20), _VMEM_CAP))

        out_pad = pl.pallas_call(
            _generator_kernel,
            out_shape=jax.ShapeDtypeStruct((B_pad, D_pad), jnp.float32),
            grid_spec=pltpu.PrefetchScalarGridSpec(
                num_scalar_prefetch=0,
                grid=(grid_steps,),
                in_specs=[
                    pl.BlockSpec((B_pad, NWZ_pad), lambda n: (0, 0)),   # ws (resident)
                    pl.BlockSpec((NWZ_pad, tile), lambda n: (0, n)),    # w_g panel
                    pl.BlockSpec((1, tile), lambda n: (0, n)),          # b_g
                ],
                out_specs=pl.BlockSpec((B_pad, tile), lambda n: (0, n)),
            ),
            compiler_params=pltpu.CompilerParams(
                dimension_semantics=("parallel",),
                vmem_limit_bytes=gen_vmem,
            ),
            cost_estimate=pl.CostEstimate(
                flops=2 * B_pad * NWZ_pad * D_pad,
                transcendentals=B_pad * D_pad,
                bytes_accessed=int(
                    B_pad * NWZ_pad * 2 + NWZ_pad * D_pad * 2
                    + D_pad * 4 + B_pad * D_pad * 4
                ),
            ),
        )(ws_bf16, packed["w_g"], packed["b_g"])

    output = out_pad[:B, :D].reshape(B, C, H, W)
    ws = ws_pad[:B, :NWZ].reshape(B, num_ws, Z)
    return output, ws


# ----------------------------------------------------------------------------
# Synthetic parameters (structurally matching the module's data flow)
# ----------------------------------------------------------------------------
def init_params(key, *, in_dim, z_dims, hidden, num_ws):
    ks = jax.random.split(key, 5)

    def lin(k, fan_in, fan_out):
        return jax.random.normal(k, (fan_in, fan_out), jnp.float32) / jnp.sqrt(fan_in)

    return {
        "w_pri": lin(ks[0], in_dim, z_dims),
        "b_pri": jnp.zeros((1, z_dims), jnp.float32),
        "w_mod_x": lin(ks[1], in_dim, hidden),
        "w_mod_z": lin(ks[2], z_dims, hidden),
        "b_mod": jnp.zeros((1, hidden), jnp.float32),
        "w_ws": lin(ks[3], hidden, num_ws * z_dims),
        "b_ws": jnp.zeros((1, num_ws * z_dims), jnp.float32),
        "w_g": lin(ks[4], num_ws * z_dims, in_dim),
        "b_g": jnp.zeros((1, in_dim), jnp.float32),
    }


if __name__ == "__main__":
    # Small shapes consistent with the module's forward (NCHW image in, image out).
    B, C, H, W = 2, 4, 16, 16
    z_dims, hidden, num_ws = 32, 64, 8
    D = C * H * W

    key = jax.random.PRNGKey(0)
    k_x, k_p = jax.random.split(key)

    x = jax.random.normal(k_x, (B, C, H, W), jnp.float32)
    params = init_params(k_p, in_dim=D, z_dims=z_dims, hidden=hidden, num_ws=num_ws)
    packed = pack_params(params)

    fwd = jax.jit(modspace_autoencoder_forward, static_argnames=("num_ws",))
    output, ws = fwd(x, packed, num_ws=num_ws)
    jax.block_until_ready((output, ws))

    assert output.shape == (B, C, H, W)
    assert ws.shape == (B, num_ws, z_dims)
    assert bool(jnp.all(jnp.isfinite(output)))

    # Pure-JAX reference with the same bf16 weights (sanity check, generous tol).
    xb = x.reshape(B, D).astype(jnp.bfloat16)
    wp = params["w_pri"].astype(jnp.bfloat16)
    wmx = params["w_mod_x"].astype(jnp.bfloat16)
    wmz = params["w_mod_z"].astype(jnp.bfloat16)
    wws = params["w_ws"].astype(jnp.bfloat16)
    wg = params["w_g"].astype(jnp.bfloat16)
    z_r = _leaky_relu(jnp.dot(xb, wp, preferred_element_type=jnp.float32) + params["b_pri"])
    h_r = _leaky_relu(
        jnp.dot(xb, wmx, preferred_element_type=jnp.float32)
        + jnp.dot(z_r.astype(jnp.bfloat16), wmz, preferred_element_type=jnp.float32)
        + params["b_mod"]
    )
    ws_r = jnp.dot(h_r.astype(jnp.bfloat16), wws, preferred_element_type=jnp.float32) + params["b_ws"]
    y_r = jnp.tanh(
        jnp.dot(ws_r.astype(jnp.bfloat16), wg, preferred_element_type=jnp.float32) + params["b_g"]
    )
    assert float(jnp.max(jnp.abs(ws.reshape(B, -1) - ws_r))) < 1e-1
    assert float(jnp.max(jnp.abs(output.reshape(B, -1) - y_r))) < 1e-1

    print("KERNEL_OK")
</pallas_src>

<mosaic_0001>
module attributes {stable_mosaic.version = 11 : i64} {
  func.func @_fused_kernel(%arg0: i32, %arg1: memref<16x1024xbf16, #tpu.memory_space<vmem>>, %arg2: memref<1024x128xbf16, #tpu.memory_space<vmem>>, %arg3: memref<32x64xbf16, #tpu.memory_space<vmem>>, %arg4: memref<64x256xbf16, #tpu.memory_space<vmem>>, %arg5: memref<1x32xf32, #tpu.memory_space<vmem>>, %arg6: memref<1x64xf32, #tpu.memory_space<vmem>>, %arg7: memref<1x256xf32, #tpu.memory_space<vmem>>, %arg8: memref<256x1024xbf16, #tpu.memory_space<vmem>>, %arg9: memref<1x1024xf32, #tpu.memory_space<vmem>>, %arg10: memref<16x1024xf32, #tpu.memory_space<vmem>>, %arg11: memref<16x256xf32, #tpu.memory_space<vmem>>) attributes {dimension_semantics = [#tpu.dimension_semantics<arbitrary>], iteration_bounds = array<i64: 1>, scalar_prefetch = 0 : i64, scratch_operands = 0 : i64, tpu.core_type = #tpu.core_type<tc>, window_params = [{pipeline_mode = #tpu.pipeline_mode<synchronous>, transform_indices = @transform_0, window_bounds = array<i64: 16, 1024>}, {pipeline_mode = #tpu.pipeline_mode<synchronous>, transform_indices = @transform_1, window_bounds = array<i64: 1024, 128>}, {pipeline_mode = #tpu.pipeline_mode<synchronous>, transform_indices = @transform_2, window_bounds = array<i64: 32, 64>}, {pipeline_mode = #tpu.pipeline_mode<synchronous>, transform_indices = @transform_3, window_bounds = array<i64: 64, 256>}, {pipeline_mode = #tpu.pipeline_mode<synchronous>, transform_indices = @transform_4, window_bounds = array<i64: 1, 32>}, {pipeline_mode = #tpu.pipeline_mode<synchronous>, transform_indices = @transform_5, window_bounds = array<i64: 1, 64>}, {pipeline_mode = #tpu.pipeline_mode<synchronous>, transform_indices = @transform_6, window_bounds = array<i64: 1, 256>}, {pipeline_mode = #tpu.pipeline_mode<synchronous>, transform_indices = @transform_7, window_bounds = array<i64: 256, 1024>}, {pipeline_mode = #tpu.pipeline_mode<synchronous>, transform_indices = @transform_8, window_bounds = array<i64: 1, 1024>}, {pipeline_mode = #tpu.pipeline_mode<synchronous>, transform_indices = @transform_9, window_bounds = array<i64: 16, 1024>}, {pipeline_mode = #tpu.pipeline_mode<synchronous>, transform_indices = @transform_10, window_bounds = array<i64: 16, 256>}]} {
    %c0 = arith.constant 0 : index
    %c0_0 = arith.constant 0 : index
    %0 = vector.load %arg1[%c0, %c0_0] : memref<16x1024xbf16, #tpu.memory_space<vmem>>, vector<16x1024xbf16>
    %c0_1 = arith.constant 0 : index
    %c0_2 = arith.constant 0 : index
    %1 = vector.load %arg2[%c0_1, %c0_2] : memref<1024x128xbf16, #tpu.memory_space<vmem>>, vector<1024x128xbf16>
    %cst = arith.constant dense<0.000000e+00> : vector<16x128xf32>
    %2 = tpu.matmul %0, %1, %cst {dimension_numbers = #tpu.dot_dimension_numbers<[1], [0], [0], [1], [0, 0, 1, 1], [], []>} : vector<16x1024xbf16>, vector<1024x128xbf16>, vector<16x128xf32> -> vector<16x128xf32>
    %3 = vector.extract_strided_slice %2 {offsets = [0, 0], sizes = [16, 32], strides = [1, 1]} : vector<16x128xf32> to vector<16x32xf32>
    %c0_3 = arith.constant 0 : index
    %c0_4 = arith.constant 0 : index
    %4 = vector.load %arg5[%c0_3, %c0_4] : memref<1x32xf32, #tpu.memory_space<vmem>>, vector<1x32xf32>
    %5 = vector.broadcast %4 : vector<1x32xf32> to vector<16x32xf32>
    %6 = arith.addf %3, %5 : vector<16x32xf32>
    %cst_5 = arith.constant 0.000000e+00 : f32
    %7 = vector.broadcast %cst_5 : f32 to vector<16x32xf32>
    %8 = arith.cmpf ogt, %6, %7 : vector<16x32xf32>
    %cst_6 = arith.constant 2.000000e-01 : f32
    %9 = vector.broadcast %cst_6 : f32 to vector<16x32xf32>
    %10 = arith.mulf %9, %6 : vector<16x32xf32>
    %11 = arith.select %8, %6, %10 : vector<16x32xi1>, vector<16x32xf32>
    %12 = vector.extract_strided_slice %2 {offsets = [0, 32], sizes = [16, 64], strides = [1, 1]} : vector<16x128xf32> to vector<16x64xf32>
    %13 = arith.truncf %11 : vector<16x32xf32> to vector<16x32xbf16>
    %c0_7 = arith.constant 0 : index
    %c0_8 = arith.constant 0 : index
    %14 = vector.load %arg3[%c0_7, %c0_8] : memref<32x64xbf16, #tpu.memory_space<vmem>>, vector<32x64xbf16>
    %cst_9 = arith.constant dense<0.000000e+00> : vector<16x64xf32>
    %15 = tpu.matmul %13, %14, %cst_9 {dimension_numbers = #tpu.dot_dimension_numbers<[1], [0], [0], [1], [0, 0, 1, 1], [], []>} : vector<16x32xbf16>, vector<32x64xbf16>, vector<16x64xf32> -> vector<16x64xf32>
    %16 = arith.addf %12, %15 : vector<16x64xf32>
    %c0_10 = arith.constant 0 : index
    %c0_11 = arith.constant 0 : index
    %17 = vector.load %arg6[%c0_10, %c0_11] : memref<1x64xf32, #tpu.memory_space<vmem>>, vector<1x64xf32>
    %18 = vector.broadcast %17 : vector<1x64xf32> to vector<16x64xf32>
    %19 = arith.addf %16, %18 : vector<16x64xf32>
    %cst_12 = arith.constant 0.000000e+00 : f32
    %20 = vector.broadcast %cst_12 : f32 to vector<16x64xf32>
    %21 = arith.cmpf ogt, %19, %20 : vector<16x64xf32>
    %cst_13 = arith.constant 2.000000e-01 : f32
    %22 = vector.broadcast %cst_13 : f32 to vector<16x64xf32>
    %23 = arith.mulf %22, %19 : vector<16x64xf32>
    %24 = arith.select %21, %19, %23 : vector<16x64xi1>, vector<16x64xf32>
    %25 = arith.truncf %24 : vector<16x64xf32> to vector<16x64xbf16>
    %c0_14 = arith.constant 0 : index
    %c0_15 = arith.constant 0 : index
    %26 = vector.load %arg4[%c0_14, %c0_15] : memref<64x256xbf16, #tpu.memory_space<vmem>>, vector<64x256xbf16>
    %cst_16 = arith.constant dense<0.000000e+00> : vector<16x256xf32>
    %27 = tpu.matmul %25, %26, %cst_16 {dimension_numbers = #tpu.dot_dimension_numbers<[1], [0], [0], [1], [0, 0, 1, 1], [], []>} : vector<16x64xbf16>, vector<64x256xbf16>, vector<16x256xf32> -> vector<16x256xf32>
    %c0_17 = arith.constant 0 : index
    %c0_18 = arith.constant 0 : index
    %28 = vector.load %arg7[%c0_17, %c0_18] : memref<1x256xf32, #tpu.memory_space<vmem>>, vector<1x256xf32>
    %29 = vector.broadcast %28 : vector<1x256xf32> to vector<16x256xf32>
    %30 = arith.addf %27, %29 : vector<16x256xf32>
    %c0_19 = arith.constant 0 : index
    %c0_20 = arith.constant 0 : index
    %31 = vector.load %arg11[%c0_19, %c0_20] : memref<16x256xf32, #tpu.memory_space<vmem>>, vector<16x256xf32>
    tpu.vector_store %arg11[%c0_19, %c0_20], %30 {strides = array<i32>} : memref<16x256xf32, #tpu.memory_space<vmem>>, vector<16x256xf32>,
    %32 = arith.truncf %30 : vector<16x256xf32> to vector<16x256xbf16>
    %c0_21 = arith.constant 0 : index
    %c0_22 = arith.constant 0 : index
    %33 = vector.load %arg8[%c0_21, %c0_22] : memref<256x1024xbf16, #tpu.memory_space<vmem>>, vector<256x1024xbf16>
    %cst_23 = arith.constant dense<0.000000e+00> : vector<16x1024xf32>
    %34 = tpu.matmul %32, %33, %cst_23 {dimension_numbers = #tpu.dot_dimension_numbers<[1], [0], [0], [1], [0, 0, 1, 1], [], []>} : vector<16x256xbf16>, vector<256x1024xbf16>, vector<16x1024xf32> -> vector<16x1024xf32>
    %c0_24 = arith.constant 0 : index
    %c0_25 = arith.constant 0 : index
    %35 = vector.load %arg9[%c0_24, %c0_25] : memref<1x1024xf32, #tpu.memory_space<vmem>>, vector<1x1024xf32>
    %36 = vector.broadcast %35 : vector<1x1024xf32> to vector<16x1024xf32>
    %37 = arith.addf %34, %36 : vector<16x1024xf32>
    %38 = math.tanh %37 : vector<16x1024xf32>
    %c0_26 = arith.constant 0 : index
    %c0_27 = arith.constant 0 : index
    %39 = vector.load %arg10[%c0_26, %c0_27] : memref<16x1024xf32, #tpu.memory_space<vmem>>, vector<16x1024xf32>
    tpu.vector_store %arg10[%c0_26, %c0_27], %38 {strides = array<i32>} : memref<16x1024xf32, #tpu.memory_space<vmem>>, vector<16x1024xf32>,
    return
  }
  func.func @transform_0(%arg0: i32) -> (i32, i32) {
    %c0_i32 = arith.constant 0 : i32
    %c0_i32_0 = arith.constant 0 : i32
    %c0_i32_1 = arith.constant 0 : i32
    return %c0_i32, %c0_i32_0 : i32, i32
  }
  func.func @transform_1(%arg0: i32) -> (i32, i32) {
    %c0_i32 = arith.constant 0 : i32
    %c0_i32_0 = arith.constant 0 : i32
    %c0_i32_1 = arith.constant 0 : i32
    return %c0_i32, %c0_i32_0 : i32, i32
  }
  func.func @transform_2(%arg0: i32) -> (i32, i32) {
    %c0_i32 = arith.constant 0 : i32
    %c0_i32_0 = arith.constant 0 : i32
    %c0_i32_1 = arith.constant 0 : i32
    return %c0_i32, %c0_i32_0 : i32, i32
  }
  func.func @transform_3(%arg0: i32) -> (i32, i32) {
    %c0_i32 = arith.constant 0 : i32
    %c0_i32_0 = arith.constant 0 : i32
    %c0_i32_1 = arith.constant 0 : i32
    return %c0_i32, %c0_i32_0 : i32, i32
  }
  func.func @transform_4(%arg0: i32) -> (i32, i32) {
    %c0_i32 = arith.constant 0 : i32
    %c0_i32_0 = arith.constant 0 : i32
    %c0_i32_1 = arith.constant 0 : i32
    return %c0_i32, %c0_i32_0 : i32, i32
  }
  func.func @transform_5(%arg0: i32) -> (i32, i32) {
    %c0_i32 = arith.constant 0 : i32
    %c0_i32_0 = arith.constant 0 : i32
    %c0_i32_1 = arith.constant 0 : i32
    return %c0_i32, %c0_i32_0 : i32, i32
  }
  func.func @transform_6(%arg0: i32) -> (i32, i32) {
    %c0_i32 = arith.constant 0 : i32
    %c0_i32_0 = arith.constant 0 : i32
    %c0_i32_1 = arith.constant 0 : i32
    return %c0_i32, %c0_i32_0 : i32, i32
  }
  func.func @transform_7(%arg0: i32) -> (i32, i32) {
    %c0_i32 = arith.constant 0 : i32
    %c0_i32_0 = arith.constant 0 : i32
    %c0_i32_1 = arith.constant 0 : i32
    return %c0_i32, %c0_i32_0 : i32, i32
  }
  func.func @transform_8(%arg0: i32) -> (i32, i32) {
    %c0_i32 = arith.constant 0 : i32
    %c0_i32_0 = arith.constant 0 : i32
    %c0_i32_1 = arith.constant 0 : i32
    return %c0_i32, %c0_i32_0 : i32, i32
  }
  func.func @transform_9(%arg0: i32) -> (i32, i32) {
    %c0_i32 = arith.constant 0 : i32
    %c0_i32_0 = arith.constant 0 : i32
    %c0_i32_1 = arith.constant 0 : i32
    return %c0_i32, %c0_i32_0 : i32, i32
  }
  func.func @transform_10(%arg0: i32) -> (i32, i32) {
    %c0_i32 = arith.constant 0 : i32
    %c0_i32_0 = arith.constant 0 : i32
    %c0_i32_1 = arith.constant 0 : i32
    return %c0_i32, %c0_i32_0 : i32, i32
  }
}

</mosaic_0001>

<llo_original>
// kernel: modspace_autoencoder_forward.1
$region0: #{modspace_autoencoder_forward.1}
  #allocation0 [shape = 'u32[]', space=smem, size = 0x4, offset = 0x4, fixed_abs, tag = 'smem constant byte address 0x4 - core index']
  #allocation1 [shape = 'u32[72,128]{1,0:T(1,128)}', space=vmem, size = 0x9000, scoped, tag = 'internal scratch']
  %s0 = inlined_call_operand.vmem [shape: bf16[16,1024], index: 0, kind: input, shape index: {}]
  %s1 = inlined_call_operand.hbm [shape: bf16[1024,128], index: 1, kind: input, shape index: {}]
  %s2 = inlined_call_operand.vmem [shape: bf16[32,64], index: 2, kind: input, shape index: {}]
  %s3 = inlined_call_operand.vmem [shape: bf16[64,256], index: 3, kind: input, shape index: {}]
  %s4 = inlined_call_operand.vmem [shape: f32[1,32], index: 4, kind: input, shape index: {}]
  %s5 = inlined_call_operand.vmem [shape: f32[1,64], index: 5, kind: input, shape index: {}]
  %s6 = inlined_call_operand.vmem [shape: f32[1,256], index: 6, kind: input, shape index: {}]
  %s7 = inlined_call_operand.hbm [shape: bf16[256,1024], index: 7, kind: input, shape index: {}]
  %s8 = inlined_call_operand.vmem [shape: f32[1,1024], index: 8, kind: input, shape index: {}]
  %s9 = inlined_call_operand.vmem [shape: f32[16,1024], index: 9, kind: output, shape index: {0}]
  %s10 = inlined_call_operand.vmem [shape: f32[16,256], index: 10, kind: output, shape index: {1}]
  %11 = xla_tuple %s9, %s10
  %s12 = sld [smem:[#allocation0]]
  $region62: #{modspace_autoencoder_forward.1} parent=0
    _
  %s14 = ssub.s32 1, %s12
  %s15 = scalar_select 0, %s14, %s12
  $region1: #{modspace_autoencoder_forward.1} parent=0
    #allocation2 [shape = 'u8[262144]{0}', space=vmem, size = 0x40000, scoped, tag = 'input window, operand 1, single buffered']
    #allocation3 [shape = 's32[1]{0}', space=sflag, size = 0x4, scoped, tag = 'scoped memory for modspace_autoencoder_forward.1']
    #allocation4 [shape = 'u8[524288]{0}', space=vmem, size = 0x80000, scoped, tag = 'input window, operand 7, single buffered']
    #allocation5 [shape = 's32[1]{0}', space=sflag, size = 0x4, scoped, tag = 'scoped memory for modspace_autoencoder_forward.1']
    %16 = vsyncpa [#allocation3], 0
    %17 = vsyncpa [#allocation5], 0
    // Predicated region
    $region2: #{modspace_autoencoder_forward.1} parent=1 // pred_check
      _
    $region3: #{modspace_autoencoder_forward.1} parent=1 // pred_check_branch
      %19 = sbr.rel (0) target = $region5
    $region4: #{modspace_autoencoder_forward.1} parent=1 // pred_region
      _
    $region5: #{modspace_autoencoder_forward.1} parent=1 // pred_fallthru
      _
    // Predicated region
    $region6: #{modspace_autoencoder_forward.1} parent=1 // pred_check
      _
    $region7: #{modspace_autoencoder_forward.1} parent=1 // pred_check_branch
      %21 = sbr.rel (0) target = $region9
    $region8: #{modspace_autoencoder_forward.1} parent=1 // pred_region
      %23 = vsyncadd [#allocation3], 0
      %s24 = sshll.u32 %s1, 4
      %s25 = int_to_ptr.hbm [resolvable:$true] %s24
      %s26 = sshll.u32 [#allocation2], 4
      %s27 = int_to_ptr.vmem [resolvable:$true] %s26
      %32 = dma.hbm_to_vmem [thread:$0]  %s25, 8192, %s27, [#allocation3], 64, 64, 4
    $region9: #{modspace_autoencoder_forward.1} parent=1 // pred_fallthru
      _
    // Predicated region
    $region10: #{modspace_autoencoder_forward.1} parent=1 // pred_check
      _
    $region11: #{modspace_autoencoder_forward.1} parent=1 // pred_check_branch
      %34 = sbr.rel (0) target = $region13
    $region12: #{modspace_autoencoder_forward.1} parent=1 // pred_region
      _
    $region13: #{modspace_autoencoder_forward.1} parent=1 // pred_fallthru
      _
    // Predicated region
    $region14: #{modspace_autoencoder_forward.1} parent=1 // pred_check
      _
    $region15: #{modspace_autoencoder_forward.1} parent=1 // pred_check_branch
      %36 = sbr.rel (0) target = $region17
    $region16: #{modspace_autoencoder_forward.1} parent=1 // pred_region
      _
    $region17: #{modspace_autoencoder_forward.1} parent=1 // pred_fallthru
      _
    // Predicated region
    $region18: #{modspace_autoencoder_forward.1} parent=1 // pred_check
      _
    $region19: #{modspace_autoencoder_forward.1} parent=1 // pred_check_branch
      %38 = sbr.rel (0) target = $region21
    $region20: #{modspace_autoencoder_forward.1} parent=1 // pred_region
      _
    $region21: #{modspace_autoencoder_forward.1} parent=1 // pred_fallthru
      _
    // Predicated region
    $region22: #{modspace_autoencoder_forward.1} parent=1 // pred_check
      _
    $region23: #{modspace_autoencoder_forward.1} parent=1 // pred_check_branch
      %40 = sbr.rel (0) target = $region25
    $region24: #{modspace_autoencoder_forward.1} parent=1 // pred_region
      _
    $region25: #{modspace_autoencoder_forward.1} parent=1 // pred_fallthru
      _
    // Predicated region
    $region26: #{modspace_autoencoder_forward.1} parent=1 // pred_check
      _
    $region27: #{modspace_autoencoder_forward.1} parent=1 // pred_check_branch
      %42 = sbr.rel (0) target = $region29
    $region28: #{modspace_autoencoder_forward.1} parent=1 // pred_region
      _
    $region29: #{modspace_autoencoder_forward.1} parent=1 // pred_fallthru
      _
    // Predicated region
    $region30: #{modspace_autoencoder_forward.1} parent=1 // pred_check
      _
    $region31: #{modspace_autoencoder_forward.1} parent=1 // pred_check_branch
      %44 = sbr.rel (0) target = $region33
    $region32: #{modspace_autoencoder_forward.1} parent=1 // pred_region
      %46 = vsyncadd [#allocation5], 0
      %s47 = sshll.u32 %s7, 4
      %s48 = int_to_ptr.hbm [resolvable:$true] %s47
      %s49 = sshll.u32 [#allocation4], 4
      %s50 = int_to_ptr.vmem [resolvable:$true] %s49
      %55 = dma.hbm_to_vmem [thread:$0]  %s48, 16384, %s50, [#allocation5], 512, 512, 32
    $region33: #{modspace_autoencoder_forward.1} parent=1 // pred_fallthru
      _
    // Predicated region
    $region34: #{modspace_autoencoder_forward.1} parent=1 // pred_check
      _
    $region35: #{modspace_autoencoder_forward.1} parent=1 // pred_check_branch
      %57 = sbr.rel (0) target = $region37
    $region36: #{modspace_autoencoder_forward.1} parent=1 // pred_region
      _
    $region37: #{modspace_autoencoder_forward.1} parent=1 // pred_fallthru
      _
    // Predicated region
    $region38: #{modspace_autoencoder_forward.1} parent=1 // pred_check
      _
    $region39: #{modspace_autoencoder_forward.1} parent=1 // pred_check_branch
      %59 = sbr.rel (0) target = $region41
    $region40: #{modspace_autoencoder_forward.1} parent=1 // pred_region
      %61 = dma.done [#allocation3], 8192
    $region41: #{modspace_autoencoder_forward.1} parent=1 // pred_fallthru
      _
    // Predicated region
    $region42: #{modspace_autoencoder_forward.1} parent=1 // pred_check
      _
    $region43: #{modspace_autoencoder_forward.1} parent=1 // pred_check_branch
      %63 = sbr.rel (0) target = $region45
    $region44: #{modspace_autoencoder_forward.1} parent=1 // pred_region
      %65 = dma.done [#allocation5], 16384
    $region45: #{modspace_autoencoder_forward.1} parent=1 // pred_fallthru
      _
    %v67 = vld [vmem:[%s0] sm:$0xff]
    %v68 = vld [vmem:[%s0 + $0x8] sm:$0xff]
    %v69 = vld [vmem:[%s0 + $0x10] sm:$0xff]
    %v70 = vld [vmem:[%s0 + $0x18] sm:$0xff]
    %v71 = vld [vmem:[%s0 + $0x20] sm:$0xff]
    %v72 = vld [vmem:[%s0 + $0x28] sm:$0xff]
    %v73 = vld [vmem:[%s0 + $0x30] sm:$0xff]
    %v74 = vld [vmem:[%s0 + $0x38] sm:$0xff]
    %v75 = vld [vmem:[#allocation2] sm:$0xf]
    %v76 = vld [vmem:[#allocation2 + $0x4] sm:$0xf]
    %v77 = vld [vmem:[#allocation2 + $0x8] sm:$0xf]
    %v78 = vld [vmem:[#allocation2 + $0xc] sm:$0xf]
    %v79 = vld [vmem:[#allocation2 + $0x10] sm:$0xf]
    %v80 = vld [vmem:[#allocation2 + $0x14] sm:$0xf]
    %v81 = vld [vmem:[#allocation2 + $0x18] sm:$0xf]
    %v82 = vld [vmem:[#allocation2 + $0x1c] sm:$0xf]
    %v83 = vld [vmem:[#allocation2 + $0x20] sm:$0xf]
    %v84 = vld [vmem:[#allocation2 + $0x24] sm:$0xf]
    %v85 = vld [vmem:[#allocation2 + $0x28] sm:$0xf]
    %v86 = vld [vmem:[#allocation2 + $0x2c] sm:$0xf]
    %v87 = vld [vmem:[#allocation2 + $0x30] sm:$0xf]
    %v88 = vld [vmem:[#allocation2 + $0x34] sm:$0xf]
    %v89 = vld [vmem:[#allocation2 + $0x38] sm:$0xf]
    %v90 = vld [vmem:[#allocation2 + $0x3c] sm:$0xf]
    %v91 = vld [vmem:[#allocation2 + $0x40] sm:$0xf]
    %v92 = vld [vmem:[#allocation2 + $0x44] sm:$0xf]
    %v93 = vld [vmem:[#allocation2 + $0x48] sm:$0xf]
    %v94 = vld [vmem:[#allocation2 + $0x4c] sm:$0xf]
    %v95 = vld [vmem:[#allocation2 + $0x50] sm:$0xf]
    %v96 = vld [vmem:[#allocation2 + $0x54] sm:$0xf]
    %v97 = vld [vmem:[#allocation2 + $0x58] sm:$0xf]
    %v98 = vld [vmem:[#allocation2 + $0x5c] sm:$0xf]
    %v99 = vld [vmem:[#allocation2 + $0x60] sm:$0xf]
    %v100 = vld [vmem:[#allocation2 + $0x64] sm:$0xf]
    %v101 = vld [vmem:[#allocation2 + $0x68] sm:$0xf]
    %v102 = vld [vmem:[#allocation2 + $0x6c] sm:$0xf]
    %v103 = vld [vmem:[#allocation2 + $0x70] sm:$0xf]
    %v104 = vld [vmem:[#allocation2 + $0x74] sm:$0xf]
    %v105 = vld [vmem:[#allocation2 + $0x78] sm:$0xf]
    %v106 = vld [vmem:[#allocation2 + $0x7c] sm:$0xf]
    %v107 = vld [vmem:[#allocation2 + $0x80] sm:$0xf]
    %v108 = vld [vmem:[#allocation2 + $0x84] sm:$0xf]
    %v109 = vld [vmem:[#allocation2 + $0x88] sm:$0xf]
    %v110 = vld [vmem:[#allocation2 + $0x8c] sm:$0xf]
    %v111 = vld [vmem:[#allocation2 + $0x90] sm:$0xf]
    %v112 = vld [vmem:[#allocation2 + $0x94] sm:$0xf]
    %v113 = vld [vmem:[#allocation2 + $0x98] sm:$0xf]
    %v114 = vld [vmem:[#allocation2 + $0x9c] sm:$0xf]
    %v115 = vld [vmem:[#allocation2 + $0xa0] sm:$0xf]
    %v116 = vld [vmem:[#allocation2 + $0xa4] sm:$0xf]
    %v117 = vld [vmem:[#allocation2 + $0xa8] sm:$0xf]
    %v118 = vld [vmem:[#allocation2 + $0xac] sm:$0xf]
    %v119 = vld [vmem:[#allocation2 + $0xb0] sm:$0xf]
    %v120 = vld [vmem:[#allocation2 + $0xb4] sm:$0xf]
    %v121 = vld [vmem:[#allocation2 + $0xb8] sm:$0xf]
    %v122 = vld [vmem:[#allocation2 + $0xbc] sm:$0xf]
    %v123 = vld [vmem:[#allocation2 + $0xc0] sm:$0xf]
    %v124 = vld [vmem:[#allocation2 + $0xc4] sm:$0xf]
    %v125 = vld [vmem:[#allocation2 + $0xc8] sm:$0xf]
    %v126 = vld [vmem:[#allocation2 + $0xcc] sm:$0xf]
    %v127 = vld [vmem:[#allocation2 + $0xd0] sm:$0xf]
    %v128 = vld [vmem:[#allocation2 + $0xd4] sm:$0xf]
    %v129 = vld [vmem:[#allocation2 + $0xd8] sm:$0xf]
    %v130 = vld [vmem:[#allocation2 + $0xdc] sm:$0xf]
    %v131 = vld [vmem:[#allocation2 + $0xe0] sm:$0xf]
    %v132 = vld [vmem:[#allocation2 + $0xe4] sm:$0xf]
    %v133 = vld [vmem:[#allocation2 + $0xe8] sm:$0xf]
    %v134 = vld [vmem:[#allocation2 + $0xec] sm:$0xf]
    %v135 = vld [vmem:[#allocation2 + $0xf0] sm:$0xf]
    %v136 = vld [vmem:[#allocation2 + $0xf4] sm:$0xf]
    %v137 = vld [vmem:[#allocation2 + $0xf8] sm:$0xf]
    %v138 = vld [vmem:[#allocation2 + $0xfc] sm:$0xf]
    %v139 = vld [vmem:[#allocation2 + $0x100] sm:$0xf]
    %v140 = vld [vmem:[#allocation2 + $0x104] sm:$0xf]
    %v141 = vld [vmem:[#allocation2 + $0x108] sm:$0xf]
    %v142 = vld [vmem:[#allocation2 + $0x10c] sm:$0xf]
    %v143 = vld [vmem:[#allocation2 + $0x110] sm:$0xf]
    %v144 = vld [vmem:[#allocation2 + $0x114] sm:$0xf]
    %v145 = vld [vmem:[#allocation2 + $0x118] sm:$0xf]
    %v146 = vld [vmem:[#allocation2 + $0x11c] sm:$0xf]
    %v147 = vld [vmem:[#allocation2 + $0x120] sm:$0xf]
    %v148 = vld [vmem:[#allocation2 + $0x124] sm:$0xf]
    %v149 = vld [vmem:[#allocation2 + $0x128] sm:$0xf]
    %v150 = vld [vmem:[#allocation2 + $0x12c] sm:$0xf]
    %v151 = vld [vmem:[#allocation2 + $0x130] sm:$0xf]
    %v152 = vld [vmem:[#allocation2 + $0x134] sm:$0xf]
    %v153 = vld [vmem:[#allocation2 + $0x138] sm:$0xf]
    %v154 = vld [vmem:[#allocation2 + $0x13c] sm:$0xf]
    %v155 = vld [vmem:[#allocation2 + $0x140] sm:$0xf]
    %v156 = vld [vmem:[#allocation2 + $0x144] sm:$0xf]
    %v157 = vld [vmem:[#allocation2 + $0x148] sm:$0xf]
    %v158 = vld [vmem:[#allocation2 + $0x14c] sm:$0xf]
    %v159 = vld [vmem:[#allocation2 + $0x150] sm:$0xf]
    %v160 = vld [vmem:[#allocation2 + $0x154] sm:$0xf]
    %v161 = vld [vmem:[#allocation2 + $0x158] sm:$0xf]
    %v162 = vld [vmem:[#allocation2 + $0x15c] sm:$0xf]
    %v163 = vld [vmem:[#allocation2 + $0x160] sm:$0xf]
    %v164 = vld [vmem:[#allocation2 + $0x164] sm:$0xf]
    %v165 = vld [vmem:[#allocation2 + $0x168] sm:$0xf]
    %v166 = vld [vmem:[#allocation2 + $0x16c] sm:$0xf]
    %v167 = vld [vmem:[#allocation2 + $0x170] sm:$0xf]
    %v168 = vld [vmem:[#allocation2 + $0x174] sm:$0xf]
    %v169 = vld [vmem:[#allocation2 + $0x178] sm:$0xf]
    %v170 = vld [vmem:[#allocation2 + $0x17c] sm:$0xf]
    %v171 = vld [vmem:[#allocation2 + $0x180] sm:$0xf]
    %v172 = vld [vmem:[#allocation2 + $0x184] sm:$0xf]
    %v173 = vld [vmem:[#allocation2 + $0x188] sm:$0xf]
    %v174 = vld [vmem:[#allocation2 + $0x18c] sm:$0xf]
    %v175 = vld [vmem:[#allocation2 + $0x190] sm:$0xf]
    %v176 = vld [vmem:[#allocation2 + $0x194] sm:$0xf]
    %v177 = vld [vmem:[#allocation2 + $0x198] sm:$0xf]
    %v178 = vld [vmem:[#allocation2 + $0x19c] sm:$0xf]
    %v179 = vld [vmem:[#allocation2 + $0x1a0] sm:$0xf]
    %v180 = vld [vmem:[#allocation2 + $0x1a4] sm:$0xf]
    %v181 = vld [vmem:[#allocation2 + $0x1a8] sm:$0xf]
    %v182 = vld [vmem:[#allocation2 + $0x1ac] sm:$0xf]
    %v183 = vld [vmem:[#allocation2 + $0x1b0] sm:$0xf]
    %v184 = vld [vmem:[#allocation2 + $0x1b4] sm:$0xf]
    %v185 = vld [vmem:[#allocation2 + $0x1b8] sm:$0xf]
    %v186 = vld [vmem:[#allocation2 + $0x1bc] sm:$0xf]
    %v187 = vld [vmem:[#allocation2 + $0x1c0] sm:$0xf]
    %v188 = vld [vmem:[#allocation2 + $0x1c4] sm:$0xf]
    %v189 = vld [vmem:[#allocation2 + $0x1c8] sm:$0xf]
    %v190 = vld [vmem:[#allocation2 + $0x1cc] sm:$0xf]
    %v191 = vld [vmem:[#allocation2 + $0x1d0] sm:$0xf]
    %v192 = vld [vmem:[#allocation2 + $0x1d4] sm:$0xf]
    %v193 = vld [vmem:[#allocation2 + $0x1d8] sm:$0xf]
    %v194 = vld [vmem:[#allocation2 + $0x1dc] sm:$0xf]
    %v195 = vld [vmem:[#allocation2 + $0x1e0] sm:$0xf]
    %v196 = vld [vmem:[#allocation2 + $0x1e4] sm:$0xf]
    %v197 = vld [vmem:[#allocation2 + $0x1e8] sm:$0xf]
    %v198 = vld [vmem:[#allocation2 + $0x1ec] sm:$0xf]
    %v199 = vld [vmem:[#allocation2 + $0x1f0] sm:$0xf]
    %v200 = vld [vmem:[#allocation2 + $0x1f4] sm:$0xf]
    %v201 = vld [vmem:[#allocation2 + $0x1f8] sm:$0xf]
    %v202 = vld [vmem:[#allocation2 + $0x1fc] sm:$0xf]
    %v211 = vunpack.c.l.b16 %v67
    %v212 = vunpack.c.h.b16 %v67
    %v213 = vunpack.c.l.b16 %v68
    %v214 = vunpack.c.h.b16 %v68
    %v215 = vunpack.c.l.b16 %v69
    %v216 = vunpack.c.h.b16 %v69
    %v217 = vunpack.c.l.b16 %v70
    %v218 = vunpack.c.h.b16 %v70
    %v219 = vunpack.c.l.b16 %v71
    %v220 = vunpack.c.h.b16 %v71
    %v221 = vunpack.c.l.b16 %v72
    %v222 = vunpack.c.h.b16 %v72
    %v223 = vunpack.c.l.b16 %v73
    %v224 = vunpack.c.h.b16 %v73
    %v225 = vunpack.c.l.b16 %v74
    %v226 = vunpack.c.h.b16 %v74
    %v227 = vpack.c.b16 %v219, %v211
    %v228 = vpack.c.b16 %v220, %v212
    %v229 = vpack.c.b16 %v221, %v213
    %v230 = vpack.c.b16 %v222, %v214
    %v231 = vpack.c.b16 %v223, %v215
    %v232 = vpack.c.b16 %v224, %v216
    %v233 = vpack.c.b16 %v225, %v217
    %v234 = vpack.c.b16 %v226, %v218
    %v371 = vunpack.c.l.b16 %v75
    %v372 = vunpack.c.l.b16 %v76
    %v373 = vunpack.c.l.b16 %v77
    %v374 = vunpack.c.l.b16 %v78
    %v375 = vunpack.c.l.b16 %v79
    %v376 = vunpack.c.l.b16 %v80
    %v377 = vunpack.c.l.b16 %v81
    %v378 = vunpack.c.l.b16 %v82
    %v379 = vunpack.c.l.b16 %v83
    %v380 = vunpack.c.l.b16 %v84
    %v381 = vunpack.c.l.b16 %v85
    %v382 = vunpack.c.l.b16 %v86
    %v383 = vunpack.c.l.b16 %v87
    %v384 = vunpack.c.l.b16 %v88
    %v385 = vunpack.c.l.b16 %v89
    %v386 = vunpack.c.l.b16 %v90
    %v387 = vunpack.c.l.b16 %v91
    %v388 = vunpack.c.l.b16 %v92
    %v389 = vunpack.c.l.b16 %v93
    %v390 = vunpack.c.l.b16 %v94
    %v391 = vunpack.c.l.b16 %v95
    %v392 = vunpack.c.l.b16 %v96
    %v393 = vunpack.c.l.b16 %v97
    %v394 = vunpack.c.l.b16 %v98
    %v395 = vunpack.c.l.b16 %v99
    %v396 = vunpack.c.l.b16 %v100
    %v397 = vunpack.c.l.b16 %v101
    %v398 = vunpack.c.l.b16 %v102
    %v399 = vunpack.c.l.b16 %v103
    %v400 = vunpack.c.l.b16 %v104
    %v401 = vunpack.c.l.b16 %v105
    %v402 = vunpack.c.l.b16 %v106
    %v403 = vunpack.c.l.b16 %v107
    %v404 = vunpack.c.l.b16 %v108
    %v405 = vunpack.c.l.b16 %v109
    %v406 = vunpack.c.l.b16 %v110
    %v407 = vunpack.c.l.b16 %v111
    %v408 = vunpack.c.l.b16 %v112
    %v409 = vunpack.c.l.b16 %v113
    %v410 = vunpack.c.l.b16 %v114
    %v411 = vunpack.c.l.b16 %v115
    %v412 = vunpack.c.l.b16 %v116
    %v413 = vunpack.c.l.b16 %v117
    %v414 = vunpack.c.l.b16 %v118
    %v415 = vunpack.c.l.b16 %v119
    %v416 = vunpack.c.l.b16 %v120
    %v417 = vunpack.c.l.b16 %v121
    %v418 = vunpack.c.l.b16 %v122
    %v419 = vunpack.c.l.b16 %v123
    %v420 = vunpack.c.l.b16 %v124
    %v421 = vunpack.c.l.b16 %v125
    %v422 = vunpack.c.l.b16 %v126
    %v423 = vunpack.c.l.b16 %v127
    %v424 = vunpack.c.l.b16 %v128
    %v425 = vunpack.c.l.b16 %v129
    %v426 = vunpack.c.l.b16 %v130
    %v427 = vunpack.c.l.b16 %v131
    %v428 = vunpack.c.l.b16 %v132
    %v429 = vunpack.c.l.b16 %v133
    %v430 = vunpack.c.l.b16 %v134
    %v431 = vunpack.c.l.b16 %v135
    %v432 = vunpack.c.l.b16 %v136
    %v433 = vunpack.c.l.b16 %v137
    %v434 = vunpack.c.l.b16 %v138
    %v435 = vunpack.c.l.b16 %v139
    %v436 = vunpack.c.l.b16 %v140
    %v437 = vunpack.c.l.b16 %v141
    %v438 = vunpack.c.l.b16 %v142
    %v439 = vunpack.c.l.b16 %v143
    %v440 = vunpack.c.l.b16 %v144
    %v441 = vunpack.c.l.b16 %v145
    %v442 = vunpack.c.l.b16 %v146
    %v443 = vunpack.c.l.b16 %v147
    %v444 = vunpack.c.l.b16 %v148
    %v445 = vunpack.c.l.b16 %v149
    %v446 = vunpack.c.l.b16 %v150
    %v447 = vunpack.c.l.b16 %v151
    %v448 = vunpack.c.l.b16 %v152
    %v449 = vunpack.c.l.b16 %v153
    %v450 = vunpack.c.l.b16 %v154
    %v451 = vunpack.c.l.b16 %v155
    %v452 = vunpack.c.l.b16 %v156
    %v453 = vunpack.c.l.b16 %v157
    %v454 = vunpack.c.l.b16 %v158
    %v455 = vunpack.c.l.b16 %v159
    %v456 = vunpack.c.l.b16 %v160
    %v457 = vunpack.c.l.b16 %v161
    %v458 = vunpack.c.l.b16 %v162
    %v459 = vunpack.c.l.b16 %v163
    %v460 = vunpack.c.l.b16 %v164
    %v461 = vunpack.c.l.b16 %v165
    %v462 = vunpack.c.l.b16 %v166
    %v463 = vunpack.c.l.b16 %v167
    %v464 = vunpack.c.l.b16 %v168
    %v465 = vunpack.c.l.b16 %v169
    %v466 = vunpack.c.l.b16 %v170
    %v467 = vunpack.c.l.b16 %v171
    %v468 = vunpack.c.l.b16 %v172
    %v469 = vunpack.c.l.b16 %v173
    %v470 = vunpack.c.l.b16 %v174
    %v471 = vunpack.c.l.b16 %v175
    %v472 = vunpack.c.l.b16 %v176
    %v473 = vunpack.c.l.b16 %v177
    %v474 = vunpack.c.l.b16 %v178
    %v475 = vunpack.c.l.b16 %v179
    %v476 = vunpack.c.l.b16 %v180
    %v477 = vunpack.c.l.b16 %v181
    %v478 = vunpack.c.l.b16 %v182
    %v479 = vunpack.c.l.b16 %v183
    %v480 = vunpack.c.l.b16 %v184
    %v481 = vunpack.c.l.b16 %v185
    %v482 = vunpack.c.l.b16 %v186
    %v483 = vunpack.c.l.b16 %v187
    %v484 = vunpack.c.l.b16 %v188
    %v485 = vunpack.c.l.b16 %v189
    %v486 = vunpack.c.l.b16 %v190
    %v487 = vunpack.c.l.b16 %v191
    %v488 = vunpack.c.l.b16 %v192
    %v489 = vunpack.c.l.b16 %v193
    %v490 = vunpack.c.l.b16 %v194
    %v491 = vunpack.c.l.b16 %v195
    %v492 = vunpack.c.l.b16 %v196
    %v493 = vunpack.c.l.b16 %v197
    %v494 = vunpack.c.l.b16 %v198
    %v495 = vunpack.c.l.b16 %v199
    %v496 = vunpack.c.l.b16 %v200
    %v497 = vunpack.c.l.b16 %v201
    %v498 = vunpack.c.l.b16 %v202
    %v499 = vpack.c.b16 %v372, %v371
    %v500 = vpack.c.b16 %v374, %v373
    %v501 = vpack.c.b16 %v376, %v375
    %v502 = vpack.c.b16 %v378, %v377
    %v503 = vpack.c.b16 %v380, %v379
    %v504 = vpack.c.b16 %v382, %v381
    %v505 = vpack.c.b16 %v384, %v383
    %v506 = vpack.c.b16 %v386, %v385
    %v507 = vpack.c.b16 %v388, %v387
    %v508 = vpack.c.b16 %v390, %v389
    %v509 = vpack.c.b16 %v392, %v391
    %v510 = vpack.c.b16 %v394, %v393
    %v511 = vpack.c.b16 %v396, %v395
    %v512 = vpack.c.b16 %v398, %v397
    %v513 = vpack.c.b16 %v400, %v399
    %v514 = vpack.c.b16 %v402, %v401
    %v515 = vpack.c.b16 %v404, %v403
    %v516 = vpack.c.b16 %v406, %v405
    %v517 = vpack.c.b16 %v408, %v407
    %v518 = vpack.c.b16 %v410, %v409
    %v519 = vpack.c.b16 %v412, %v411
    %v520 = vpack.c.b16 %v414, %v413
    %v521 = vpack.c.b16 %v416, %v415
    %v522 = vpack.c.b16 %v418, %v417
    %v523 = vpack.c.b16 %v420, %v419
    %v524 = vpack.c.b16 %v422, %v421
    %v525 = vpack.c.b16 %v424, %v423
    %v526 = vpack.c.b16 %v426, %v425
    %v527 = vpack.c.b16 %v428, %v427
    %v528 = vpack.c.b16 %v430, %v429
    %v529 = vpack.c.b16 %v432, %v431
    %v530 = vpack.c.b16 %v434, %v433
    %v531 = vpack.c.b16 %v436, %v435
    %v532 = vpack.c.b16 %v438, %v437
    %v533 = vpack.c.b16 %v440, %v439
    %v534 = vpack.c.b16 %v442, %v441
    %v535 = vpack.c.b16 %v444, %v443
    %v536 = vpack.c.b16 %v446, %v445
    %v537 = vpack.c.b16 %v448, %v447
    %v538 = vpack.c.b16 %v450, %v449
    %v539 = vpack.c.b16 %v452, %v451
    %v540 = vpack.c.b16 %v454, %v453
    %v541 = vpack.c.b16 %v456, %v455
    %v542 = vpack.c.b16 %v458, %v457
    %v543 = vpack.c.b16 %v460, %v459
    %v544 = vpack.c.b16 %v462, %v461
    %v545 = vpack.c.b16 %v464, %v463
    %v546 = vpack.c.b16 %v466, %v465
    %v547 = vpack.c.b16 %v468, %v467
    %v548 = vpack.c.b16 %v470, %v469
    %v549 = vpack.c.b16 %v472, %v471
    %v550 = vpack.c.b16 %v474, %v473
    %v551 = vpack.c.b16 %v476, %v475
    %v552 = vpack.c.b16 %v478, %v477
    %v553 = vpack.c.b16 %v480, %v479
    %v554 = vpack.c.b16 %v482, %v481
    %v555 = vpack.c.b16 %v484, %v483
    %v556 = vpack.c.b16 %v486, %v485
    %v557 = vpack.c.b16 %v488, %v487
    %v558 = vpack.c.b16 %v490, %v489
    %v559 = vpack.c.b16 %v492, %v491
    %v560 = vpack.c.b16 %v494, %v493
    %v561 = vpack.c.b16 %v496, %v495
    %v562 = vpack.c.b16 %v498, %v497
    %627 = vmatpush.bf16.msra.mxu0 %v506
    %628 = vmatpush.bf16.msra.mxu0 %v505
    %629 = vmatpush.bf16.msra.mxu0 %v504
    %630 = vmatpush.bf16.msra.mxu0 %v503
    %631 = vmatpush.bf16.msra.mxu0 %v502
    %632 = vmatpush.bf16.msra.mxu0 %v501
    %633 = vmatpush.bf16.msra.mxu0 %v500
    %634 = vmatpush.bf16.msra.mxu0 %v499
    %635 = vmatmul.bf16.gmra.mxu0 %v227
    %v636 = vpop.f32.mrf.mxu0
    %v637 = vadd.f32 0.0, %v636
    %v638 = vpop.f32.mrf.mxu0
    %v639 = vadd.f32 0.0, %v638
    %640 = vdwg.mxu0
    %641 = vmatpush.bf16.msra.mxu0 %v514
    %642 = vmatpush.bf16.msra.mxu0 %v513
    %643 = vmatpush.bf16.msra.mxu0 %v512
    %644 = vmatpush.bf16.msra.mxu0 %v511
    %645 = vmatpush.bf16.msra.mxu0 %v510
    %646 = vmatpush.bf16.msra.mxu0 %v509
    %647 = vmatpush.bf16.msra.mxu0 %v508
    %648 = vmatpush.bf16.msra.mxu0 %v507
    %649 = vmatmul.bf16.gmra.mxu0 %v228
    %v650 = vpop.f32.mrf.mxu0
    %v651 = vadd.f32 %v637, %v650
    %v652 = vpop.f32.mrf.mxu0
    %v653 = vadd.f32 %v639, %v652
    %654 = vdwg.mxu0
    %655 = vmatpush.bf16.msra.mxu0 %v522
    %656 = vmatpush.bf16.msra.mxu0 %v521
    %657 = vmatpush.bf16.msra.mxu0 %v520
    %658 = vmatpush.bf16.msra.mxu0 %v519
    %659 = vmatpush.bf16.msra.mxu0 %v518
    %660 = vmatpush.bf16.msra.mxu0 %v517
    %661 = vmatpush.bf16.msra.mxu0 %v516
    %662 = vmatpush.bf16.msra.mxu0 %v515
    %663 = vmatmul.bf16.gmra.mxu0 %v229
    %v664 = vpop.f32.mrf.mxu0
    %v665 = vadd.f32 %v651, %v664
    %v666 = vpop.f32.mrf.mxu0
    %v667 = vadd.f32 %v653, %v666
    %668 = vdwg.mxu0
    %669 = vmatpush.bf16.msra.mxu0 %v530
    %670 = vmatpush.bf16.msra.mxu0 %v529
    %671 = vmatpush.bf16.msra.mxu0 %v528
    %672 = vmatpush.bf16.msra.mxu0 %v527
    %673 = vmatpush.bf16.msra.mxu0 %v526
    %674 = vmatpush.bf16.msra.mxu0 %v525
    %675 = vmatpush.bf16.msra.mxu0 %v524
    %676 = vmatpush.bf16.msra.mxu0 %v523
    %677 = vmatmul.bf16.gmra.mxu0 %v230
    %v678 = vpop.f32.mrf.mxu0
    %v679 = vadd.f32 %v665, %v678
    %v680 = vpop.f32.mrf.mxu0
    %v681 = vadd.f32 %v667, %v680
    %682 = vdwg.mxu0
    %683 = vmatpush.bf16.msra.mxu0 %v538
    %684 = vmatpush.bf16.msra.mxu0 %v537
    %685 = vmatpush.bf16.msra.mxu0 %v536
    %686 = vmatpush.bf16.msra.mxu0 %v535
    %687 = vmatpush.bf16.msra.mxu0 %v534
    %688 = vmatpush.bf16.msra.mxu0 %v533
    %689 = vmatpush.bf16.msra.mxu0 %v532
    %690 = vmatpush.bf16.msra.mxu0 %v531
    %691 = vmatmul.bf16.gmra.mxu0 %v231
    %v692 = vpop.f32.mrf.mxu0
    %v693 = vadd.f32 %v679, %v692
    %v694 = vpop.f32.mrf.mxu0
    %v695 = vadd.f32 %v681, %v694
    %696 = vdwg.mxu0
    %697 = vmatpush.bf16.msra.mxu0 %v546
    %698 = vmatpush.bf16.msra.mxu0 %v545
    %699 = vmatpush.bf16.msra.mxu0 %v544
    %700 = vmatpush.bf16.msra.mxu0 %v543
    %701 = vmatpush.bf16.msra.mxu0 %v542
    %702 = vmatpush.bf16.msra.mxu0 %v541
    %703 = vmatpush.bf16.msra.mxu0 %v540
    %704 = vmatpush.bf16.msra.mxu0 %v539
    %705 = vmatmul.bf16.gmra.mxu0 %v232
    %v706 = vpop.f32.mrf.mxu0
    %v707 = vadd.f32 %v693, %v706
    %v708 = vpop.f32.mrf.mxu0
    %v709 = vadd.f32 %v695, %v708
    %710 = vdwg.mxu0
    %711 = vmatpush.bf16.msra.mxu0 %v554
    %712 = vmatpush.bf16.msra.mxu0 %v553
    %713 = vmatpush.bf16.msra.mxu0 %v552
    %714 = vmatpush.bf16.msra.mxu0 %v551
    %715 = vmatpush.bf16.msra.mxu0 %v550
    %716 = vmatpush.bf16.msra.mxu0 %v549
    %717 = vmatpush.bf16.msra.mxu0 %v548
    %718 = vmatpush.bf16.msra.mxu0 %v547
    %719 = vmatmul.bf16.gmra.mxu0 %v233
    %v720 = vpop.f32.mrf.mxu0
    %v721 = vadd.f32 %v707, %v720
    %v722 = vpop.f32.mrf.mxu0
    %v723 = vadd.f32 %v709, %v722
    %724 = vdwg.mxu0
    %725 = vmatpush.bf16.msra.mxu0 %v562
    %726 = vmatpush.bf16.msra.mxu0 %v561
    %727 = vmatpush.bf16.msra.mxu0 %v560
    %728 = vmatpush.bf16.msra.mxu0 %v559
    %729 = vmatpush.bf16.msra.mxu0 %v558
    %730 = vmatpush.bf16.msra.mxu0 %v557
    %731 = vmatpush.bf16.msra.mxu0 %v556
    %732 = vmatpush.bf16.msra.mxu0 %v555
    %733 = vmatmul.bf16.gmra.mxu0 %v234
    %v734 = vpop.f32.mrf.mxu0
    %v735 = vadd.f32 %v721, %v734
    %v736 = vpop.f32.mrf.mxu0
    %v737 = vadd.f32 %v723, %v736
    %738 = vdwg.mxu0
    %v739 = vld [vmem:[%s4] sm:$0x1]
    %v741 = vperm.slane %v739, 0
    %v743 = vadd.f32 %v735, %v741
    %v744 = vadd.f32 %v737, %v741
    %vm745 = vcmp.gt.f32.partialorder %v743, 0.0
    %vm746 = vcmp.gt.f32.partialorder %v744, 0.0
    %v747 = vmul.f32 %v743, 0.2
    %v748 = vmul.f32 %v744, 0.2
    %v749 = vsel %vm745, %v743, %v747
    %v750 = vsel %vm746, %v744, %v748
    %v751 = vpack.c.bf16 %v750, %v749
    %v752 = vld [vmem:[%s2] sm:$0xf]
    %v753 = vld [vmem:[%s2 + $0x4] sm:$0xf]
    %v754 = vld [vmem:[%s2 + $0x8] sm:$0xf]
    %v755 = vld [vmem:[%s2 + $0xc] sm:$0xf]
    %v760 = vunpack.c.l.b16 %v752
    %v761 = vunpack.c.l.b16 %v753
    %v762 = vunpack.c.l.b16 %v754
    %v763 = vunpack.c.l.b16 %v755
    %v764 = vpack.c.b16 %v761, %v760
    %v765 = vpack.c.b16 %v763, %v762
    %vm768 = vcmask 261120
    %v770 = vsel %vm768, %v751, 0
    %772 = vmatpush.bf16.msra.mxu0 0
    %773 = vmatpush.bf16.msra.mxu0 0
    %774 = vmatpush.bf16.msra.mxu0 0
    %775 = vmatpush.bf16.msra.mxu0 0
    %776 = vmatpush.bf16.msra.mxu0 0
    %777 = vmatpush.bf16.msra.mxu0 0
    %778 = vmatpush.bf16.msra.mxu0 %v765
    %779 = vmatpush.bf16.msra.mxu0 %v764
    %780 = vmatmul.bf16.gmra.mxu0 %v770
    %v781 = vpop.f32.mrf.mxu0
    %v782 = vadd.f32 0.0, %v781
    %v783 = vpop.f32.mrf.mxu0
    %v784 = vadd.f32 0.0, %v783
    %785 = vdwg.mxu0
    %788 = vrot.lane.b32.xlu0 %v782, 32
    %v789 = vpop.permute.xlu0 %788
    %790 = vrot.lane.b32.xlu0 %v784, 32
    %v791 = vpop.permute.xlu0 %790
    %v794 = vadd.f32 %v735, %v789
    %v795 = vadd.f32 %v737, %v791
    %v796 = vld [vmem:[%s5] sm:$0x1]
    %v798 = vperm.slane %v796, 0
    %799 = vrot.lane.b32.xlu0 %v798, 32
    %v800 = vpop.permute.xlu0 %799
    %v802 = vadd.f32 %v794, %v800
    %v803 = vadd.f32 %v795, %v800
    %vm804 = vcmp.gt.f32.partialorder %v802, 0.0
    %vm805 = vcmp.gt.f32.partialorder %v803, 0.0
    %v806 = vmul.f32 %v802, 0.2
    %v807 = vmul.f32 %v803, 0.2
    %v808 = vsel %vm804, %v802, %v806
    %v809 = vsel %vm805, %v803, %v807
    %v810 = vpack.c.bf16 %v809, %v808
    %v811 = vld [vmem:[%s3] sm:$0xff]
    %v812 = vld [vmem:[%s3 + $0x8] sm:$0xff]
    %v813 = vld [vmem:[%s3 + $0x10] sm:$0xff]
    %v814 = vld [vmem:[%s3 + $0x18] sm:$0xff]
    %v815 = vld [vmem:[%s3 + $0x20] sm:$0xff]
    %v816 = vld [vmem:[%s3 + $0x28] sm:$0xff]
    %v817 = vld [vmem:[%s3 + $0x30] sm:$0xff]
    %v818 = vld [vmem:[%s3 + $0x38] sm:$0xff]
    %v819 = vld [vmem:[%s6] sm:$0x3]
    %v821 = vperm.slane %v819, 0
    %v822 = vperm.slane %v819, 1
    %826 = vrot.lane.b32.xlu0 %v810, 96
    %v827 = vpop.permute.xlu0 %826
    %v836 = vunpack.c.l.b16 %v811
    %v837 = vunpack.c.h.b16 %v811
    %v838 = vunpack.c.l.b16 %v812
    %v839 = vunpack.c.h.b16 %v812
    %v840 = vunpack.c.l.b16 %v813
    %v841 = vunpack.c.h.b16 %v813
    %v842 = vunpack.c.l.b16 %v814
    %v843 = vunpack.c.h.b16 %v814
    %v844 = vunpack.c.l.b16 %v815
    %v845 = vunpack.c.h.b16 %v815
    %v846 = vunpack.c.l.b16 %v816
    %v847 = vunpack.c.h.b16 %v816
    %v848 = vunpack.c.l.b16 %v817
    %v849 = vunpack.c.h.b16 %v817
    %v850 = vunpack.c.l.b16 %v818
    %v851 = vunpack.c.h.b16 %v818
    %v852 = vpack.c.b16 %v838, %v836
    %v853 = vpack.c.b16 %v839, %v837
    %v854 = vpack.c.b16 %v842, %v840
    %v855 = vpack.c.b16 %v843, %v841
    %v856 = vpack.c.b16 %v846, %v844
    %v857 = vpack.c.b16 %v847, %v845
    %v858 = vpack.c.b16 %v850, %v848
    %v859 = vpack.c.b16 %v851, %v849
    %vm868 = vcmask 523264
    %v870 = vsel %vm868, %v827, 0
    %872 = vmatpush.bf16.msra.mxu0 0
    %873 = vmatpush.bf16.msra.mxu0 0
    %874 = vmatpush.bf16.msra.mxu0 0
    %875 = vmatpush.bf16.msra.mxu0 0
    %876 = vmatpush.bf16.msra.mxu0 %v858
    %877 = vmatpush.bf16.msra.mxu0 %v856
    %878 = vmatpush.bf16.msra.mxu0 %v854
    %879 = vmatpush.bf16.msra.mxu0 %v852
    %880 = vmatmul.bf16.gmra.mxu0 %v870
    %v881 = vpop.f32.mrf.mxu0
    %v882 = vadd.f32 %v821, %v881
    %v883 = vpop.f32.mrf.mxu0
    %v884 = vadd.f32 %v821, %v883
    %885 = vdwg.mxu0
    %886 = vmatpush.bf16.msra.mxu0 0
    %887 = vmatpush.bf16.msra.mxu0 0
    %888 = vmatpush.bf16.msra.mxu0 0
    %889 = vmatpush.bf16.msra.mxu0 0
    %890 = vmatpush.bf16.msra.mxu0 %v859
    %891 = vmatpush.bf16.msra.mxu0 %v857
    %892 = vmatpush.bf16.msra.mxu0 %v855
    %893 = vmatpush.bf16.msra.mxu0 %v853
    %894 = vmatmul.bf16.gmra.mxu0 %v870
    %v895 = vpop.f32.mrf.mxu0
    %v896 = vadd.f32 %v822, %v895
    %v897 = vpop.f32.mrf.mxu0
    %v898 = vadd.f32 %v822, %v897
    %899 = vdwg.mxu0
    %900 = vst [vmem:[%s10] sm:$0xff] %v882
    %901 = vst [vmem:[%s10 + $0x8] sm:$0xff] %v896
    %902 = vst [vmem:[%s10 + $0x10] sm:$0xff] %v884
    %903 = vst [vmem:[%s10 + $0x18] sm:$0xff] %v898
    %v904 = vpack.c.bf16 %v884, %v882
    %v905 = vpack.c.bf16 %v898, %v896
    %v906 = vld [vmem:[#allocation4] sm:$0xff]
    %v907 = vld [vmem:[#allocation4 + $0x8] sm:$0xff]
    %v908 = vld [vmem:[#allocation4 + $0x10] sm:$0xff]
    %v909 = vld [vmem:[#allocation4 + $0x18] sm:$0xff]
    %v910 = vld [vmem:[#allocation4 + $0x20] sm:$0xff]
    %v911 = vld [vmem:[#allocation4 + $0x28] sm:$0xff]
    %v912 = vld [vmem:[#allocation4 + $0x30] sm:$0xff]
    %v913 = vld [vmem:[#allocation4 + $0x38] sm:$0xff]
    %v914 = vld [vmem:[#allocation4 + $0x40] sm:$0xff]
    %v915 = vld [vmem:[#allocation4 + $0x48] sm:$0xff]
    %v916 = vld [vmem:[#allocation4 + $0x50] sm:$0xff]
    %v917 = vld [vmem:[#allocation4 + $0x58] sm:$0xff]
    %v918 = vld [vmem:[#allocation4 + $0x60] sm:$0xff]
    %v919 = vld [vmem:[#allocation4 + $0x68] sm:$0xff]
    %v920 = vld [vmem:[#allocation4 + $0x70] sm:$0xff]
    %v921 = vld [vmem:[#allocation4 + $0x78] sm:$0xff]
    %v922 = vld [vmem:[#allocation4 + $0x80] sm:$0xff]
    %v923 = vld [vmem:[#allocation4 + $0x88] sm:$0xff]
    %v924 = vld [vmem:[#allocation4 + $0x90] sm:$0xff]
    %v925 = vld [vmem:[#allocation4 + $0x98] sm:$0xff]
    %v926 = vld [vmem:[#allocation4 + $0xa0] sm:$0xff]
    %v927 = vld [vmem:[#allocation4 + $0xa8] sm:$0xff]
    %v928 = vld [vmem:[#allocation4 + $0xb0] sm:$0xff]
    %v929 = vld [vmem:[#allocation4 + $0xb8] sm:$0xff]
    %v930 = vld [vmem:[#allocation4 + $0xc0] sm:$0xff]
    %v931 = vld [vmem:[#allocation4 + $0xc8] sm:$0xff]
    %v932 = vld [vmem:[#allocation4 + $0xd0] sm:$0xff]
    %v933 = vld [vmem:[#allocation4 + $0xd8] sm:$0xff]
    %v934 = vld [vmem:[#allocation4 + $0xe0] sm:$0xff]
    %v935 = vld [vmem:[#allocation4 + $0xe8] sm:$0xff]
    %v936 = vld [vmem:[#allocation4 + $0xf0] sm:$0xff]
    %v937 = vld [vmem:[#allocation4 + $0xf8] sm:$0xff]
    %v938 = vld [vmem:[#allocation4 + $0x100] sm:$0xff]
    %v939 = vld [vmem:[#allocation4 + $0x108] sm:$0xff]
    %v940 = vld [vmem:[#allocation4 + $0x110] sm:$0xff]
    %v941 = vld [vmem:[#allocation4 + $0x118] sm:$0xff]
    %v942 = vld [vmem:[#allocation4 + $0x120] sm:$0xff]
    %v943 = vld [vmem:[#allocation4 + $0x128] sm:$0xff]
    %v944 = vld [vmem:[#allocation4 + $0x130] sm:$0xff]
    %v945 = vld [vmem:[#allocation4 + $0x138] sm:$0xff]
    %v946 = vld [vmem:[#allocation4 + $0x140] sm:$0xff]
    %v947 = vld [vmem:[#allocation4 + $0x148] sm:$0xff]
    %v948 = vld [vmem:[#allocation4 + $0x150] sm:$0xff]
    %v949 = vld [vmem:[#allocation4 + $0x158] sm:$0xff]
    %v950 = vld [vmem:[#allocation4 + $0x160] sm:$0xff]
    %v951 = vld [vmem:[#allocation4 + $0x168] sm:$0xff]
    %v952 = vld [vmem:[#allocation4 + $0x170] sm:$0xff]
    %v953 = vld [vmem:[#allocation4 + $0x178] sm:$0xff]
    %v954 = vld [vmem:[#allocation4 + $0x180] sm:$0xff]
    %v955 = vld [vmem:[#allocation4 + $0x188] sm:$0xff]
    %v956 = vld [vmem:[#allocation4 + $0x190] sm:$0xff]
    %v957 = vld [vmem:[#allocation4 + $0x198] sm:$0xff]
    %v958 = vld [vmem:[#allocation4 + $0x1a0] sm:$0xff]
    %v959 = vld [vmem:[#allocation4 + $0x1a8] sm:$0xff]
    %v960 = vld [vmem:[#allocation4 + $0x1b0] sm:$0xff]
    %v961 = vld [vmem:[#allocation4 + $0x1b8] sm:$0xff]
    %v962 = vld [vmem:[#allocation4 + $0x1c0] sm:$0xff]
    %v963 = vld [vmem:[#allocation4 + $0x1c8] sm:$0xff]
    %v964 = vld [vmem:[#allocation4 + $0x1d0] sm:$0xff]
    %v965 = vld [vmem:[#allocation4 + $0x1d8] sm:$0xff]
    %v966 = vld [vmem:[#allocation4 + $0x1e0] sm:$0xff]
    %v967 = vld [vmem:[#allocation4 + $0x1e8] sm:$0xff]
    %v968 = vld [vmem:[#allocation4 + $0x1f0] sm:$0xff]
    %v969 = vld [vmem:[#allocation4 + $0x1f8] sm:$0xff]
    %v970 = vld [vmem:[#allocation4 + $0x200] sm:$0xff]
    %v971 = vld [vmem:[#allocation4 + $0x208] sm:$0xff]
    %v972 = vld [vmem:[#allocation4 + $0x210] sm:$0xff]
    %v973 = vld [vmem:[#allocation4 + $0x218] sm:$0xff]
    %v974 = vld [vmem:[#allocation4 + $0x220] sm:$0xff]
    %v975 = vld [vmem:[#allocation4 + $0x228] sm:$0xff]
    %v976 = vld [vmem:[#allocation4 + $0x230] sm:$0xff]
    %v977 = vld [vmem:[#allocation4 + $0x238] sm:$0xff]
    %v978 = vld [vmem:[#allocation4 + $0x240] sm:$0xff]
    %v979 = vld [vmem:[#allocation4 + $0x248] sm:$0xff]
    %v980 = vld [vmem:[#allocation4 + $0x250] sm:$0xff]
    %v981 = vld [vmem:[#allocation4 + $0x258] sm:$0xff]
    %v982 = vld [vmem:[#allocation4 + $0x260] sm:$0xff]
    %v983 = vld [vmem:[#allocation4 + $0x268] sm:$0xff]
    %v984 = vld [vmem:[#allocation4 + $0x270] sm:$0xff]
    %v985 = vld [vmem:[#allocation4 + $0x278] sm:$0xff]
    %v986 = vld [vmem:[#allocation4 + $0x280] sm:$0xff]
    %v987 = vld [vmem:[#allocation4 + $0x288] sm:$0xff]
    %v988 = vld [vmem:[#allocation4 + $0x290] sm:$0xff]
    %v989 = vld [vmem:[#allocation4 + $0x298] sm:$0xff]
    %v990 = vld [vmem:[#allocation4 + $0x2a0] sm:$0xff]
    %v991 = vld [vmem:[#allocation4 + $0x2a8] sm:$0xff]
    %v992 = vld [vmem:[#allocation4 + $0x2b0] sm:$0xff]
    %v993 = vld [vmem:[#allocation4 + $0x2b8] sm:$0xff]
    %v994 = vld [vmem:[#allocation4 + $0x2c0] sm:$0xff]
    %v995 = vld [vmem:[#allocation4 + $0x2c8] sm:$0xff]
    %v996 = vld [vmem:[#allocation4 + $0x2d0] sm:$0xff]
    %v997 = vld [vmem:[#allocation4 + $0x2d8] sm:$0xff]
    %v998 = vld [vmem:[#allocation4 + $0x2e0] sm:$0xff]
    %v999 = vld [vmem:[#allocation4 + $0x2e8] sm:$0xff]
    %v1000 = vld [vmem:[#allocation4 + $0x2f0] sm:$0xff]
    %v1001 = vld [vmem:[#allocation4 + $0x2f8] sm:$0xff]
    %v1002 = vld [vmem:[#allocation4 + $0x300] sm:$0xff]
    %v1003 = vld [vmem:[#allocation4 + $0x308] sm:$0xff]
    %v1004 = vld [vmem:[#allocation4 + $0x310] sm:$0xff]
    %v1005 = vld [vmem:[#allocation4 + $0x318] sm:$0xff]
    %v1006 = vld [vmem:[#allocation4 + $0x320] sm:$0xff]
    %v1007 = vld [vmem:[#allocation4 + $0x328] sm:$0xff]
    %v1008 = vld [vmem:[#allocation4 + $0x330] sm:$0xff]
    %v1009 = vld [vmem:[#allocation4 + $0x338] sm:$0xff]
    %v1010 = vld [vmem:[#allocation4 + $0x340] sm:$0xff]
    %v1011 = vld [vmem:[#allocation4 + $0x348] sm:$0xff]
    %v1012 = vld [vmem:[#allocation4 + $0x350] sm:$0xff]
    %v1013 = vld [vmem:[#allocation4 + $0x358] sm:$0xff]
    %v1014 = vld [vmem:[#allocation4 + $0x360] sm:$0xff]
    %v1015 = vld [vmem:[#allocation4 + $0x368] sm:$0xff]
    %v1016 = vld [vmem:[#allocation4 + $0x370] sm:$0xff]
    %v1017 = vld [vmem:[#allocation4 + $0x378] sm:$0xff]
    %v1018 = vld [vmem:[#allocation4 + $0x380] sm:$0xff]
    %v1019 = vld [vmem:[#allocation4 + $0x388] sm:$0xff]
    %v1020 = vld [vmem:[#allocation4 + $0x390] sm:$0xff]
    %v1021 = vld [vmem:[#allocation4 + $0x398] sm:$0xff]
    %v1022 = vld [vmem:[#allocation4 + $0x3a0] sm:$0xff]
    %v1023 = vld [vmem:[#allocation4 + $0x3a8] sm:$0xff]
    %v1024 = vld [vmem:[#allocation4 + $0x3b0] sm:$0xff]
    %v1025 = vld [vmem:[#allocation4 + $0x3b8] sm:$0xff]
    %v1026 = vld [vmem:[#allocation4 + $0x3c0] sm:$0xff]
    %v1027 = vld [vmem:[#allocation4 + $0x3c8] sm:$0xff]
    %v1028 = vld [vmem:[#allocation4 + $0x3d0] sm:$0xff]
    %v1029 = vld [vmem:[#allocation4 + $0x3d8] sm:$0xff]
    %v1030 = vld [vmem:[#allocation4 + $0x3e0] sm:$0xff]
    %v1031 = vld [vmem:[#allocation4 + $0x3e8] sm:$0xff]
    %v1032 = vld [vmem:[#allocation4 + $0x3f0] sm:$0xff]
    %v1033 = vld [vmem:[#allocation4 + $0x3f8] sm:$0xff]
    %v1034 = vld [vmem:[%s8] sm:$0xff]
    %v1036 = vperm.slane %v1034, 0
    %v1037 = vperm.slane %v1034, 1
    %v1038 = vperm.slane %v1034, 2
    %v1039 = vperm.slane %v1034, 3
    %v1040 = vperm.slane %v1034, 4
    %v1041 = vperm.slane %v1034, 5
    %v1042 = vperm.slane %v1034, 6
    %v1043 = vperm.slane %v1034, 7
    %v1180 = vunpack.c.l.b16 %v906
    %v1181 = vunpack.c.h.b16 %v906
    %v1182 = vunpack.c.l.b16 %v907
    %v1183 = vunpack.c.h.b16 %v907
    %v1184 = vunpack.c.l.b16 %v908
    %v1185 = vunpack.c.h.b16 %v908
    %v1186 = vunpack.c.l.b16 %v909
    %v1187 = vunpack.c.h.b16 %v909
    %v1188 = vunpack.c.l.b16 %v910
    %v1189 = vunpack.c.h.b16 %v910
    %v1190 = vunpack.c.l.b16 %v911
    %v1191 = vunpack.c.h.b16 %v911
    %v1192 = vunpack.c.l.b16 %v912
    %v1193 = vunpack.c.h.b16 %v912
    %v1194 = vunpack.c.l.b16 %v913
    %v1195 = vunpack.c.h.b16 %v913
    %v1196 = vunpack.c.l.b16 %v914
    %v1197 = vunpack.c.h.b16 %v914
    %v1198 = vunpack.c.l.b16 %v915
    %v1199 = vunpack.c.h.b16 %v915
    %v1200 = vunpack.c.l.b16 %v916
    %v1201 = vunpack.c.h.b16 %v916
    %v1202 = vunpack.c.l.b16 %v917
    %v1203 = vunpack.c.h.b16 %v917
    %v1204 = vunpack.c.l.b16 %v918
    %v1205 = vunpack.c.h.b16 %v918
    %v1206 = vunpack.c.l.b16 %v919
    %v1207 = vunpack.c.h.b16 %v919
    %v1208 = vunpack.c.l.b16 %v920
    %v1209 = vunpack.c.h.b16 %v920
    %v1210 = vunpack.c.l.b16 %v921
    %v1211 = vunpack.c.h.b16 %v921
    %v1212 = vunpack.c.l.b16 %v922
    %v1213 = vunpack.c.h.b16 %v922
    %v1214 = vunpack.c.l.b16 %v923
    %v1215 = vunpack.c.h.b16 %v923
    %v1216 = vunpack.c.l.b16 %v924
    %v1217 = vunpack.c.h.b16 %v924
    %v1218 = vunpack.c.l.b16 %v925
    %v1219 = vunpack.c.h.b16 %v925
    %v1220 = vunpack.c.l.b16 %v926
    %v1221 = vunpack.c.h.b16 %v926
    %v1222 = vunpack.c.l.b16 %v927
    %v1223 = vunpack.c.h.b16 %v927
    %v1224 = vunpack.c.l.b16 %v928
    %v1225 = vunpack.c.h.b16 %v928
    %v1226 = vunpack.c.l.b16 %v929
    %v1227 = vunpack.c.h.b16 %v929
    %v1228 = vunpack.c.l.b16 %v930
    %v1229 = vunpack.c.h.b16 %v930
    %v1230 = vunpack.c.l.b16 %v931
    %v1231 = vunpack.c.h.b16 %v931
    %v1232 = vunpack.c.l.b16 %v932
    %v1233 = vunpack.c.h.b16 %v932
    %v1234 = vunpack.c.l.b16 %v933
    %v1235 = vunpack.c.h.b16 %v933
    %v1236 = vunpack.c.l.b16 %v934
    %v1237 = vunpack.c.h.b16 %v934
    %v1238 = vunpack.c.l.b16 %v935
    %v1239 = vunpack.c.h.b16 %v935
    %v1240 = vunpack.c.l.b16 %v936
    %v1241 = vunpack.c.h.b16 %v936
    %v1242 = vunpack.c.l.b16 %v937
    %v1243 = vunpack.c.h.b16 %v937
    %v1244 = vunpack.c.l.b16 %v938
    %v1245 = vunpack.c.h.b16 %v938
    %v1246 = vunpack.c.l.b16 %v939
    %v1247 = vunpack.c.h.b16 %v939
    %v1248 = vunpack.c.l.b16 %v940
    %v1249 = vunpack.c.h.b16 %v940
    %v1250 = vunpack.c.l.b16 %v941
    %v1251 = vunpack.c.h.b16 %v941
    %v1252 = vunpack.c.l.b16 %v942
    %v1253 = vunpack.c.h.b16 %v942
    %v1254 = vunpack.c.l.b16 %v943
    %v1255 = vunpack.c.h.b16 %v943
    %v1256 = vunpack.c.l.b16 %v944
    %v1257 = vunpack.c.h.b16 %v944
    %v1258 = vunpack.c.l.b16 %v945
    %v1259 = vunpack.c.h.b16 %v945
    %v1260 = vunpack.c.l.b16 %v946
    %v1261 = vunpack.c.h.b16 %v946
    %v1262 = vunpack.c.l.b16 %v947
    %v1263 = vunpack.c.h.b16 %v947
    %v1264 = vunpack.c.l.b16 %v948
    %v1265 = vunpack.c.h.b16 %v948
    %v1266 = vunpack.c.l.b16 %v949
    %v1267 = vunpack.c.h.b16 %v949
    %v1268 = vunpack.c.l.b16 %v950
    %v1269 = vunpack.c.h.b16 %v950
    %v1270 = vunpack.c.l.b16 %v951
    %v1271 = vunpack.c.h.b16 %v951
    %v1272 = vunpack.c.l.b16 %v952
    %v1273 = vunpack.c.h.b16 %v952
    %v1274 = vunpack.c.l.b16 %v953
    %v1275 = vunpack.c.h.b16 %v953
    %v1276 = vunpack.c.l.b16 %v954
    %v1277 = vunpack.c.h.b16 %v954
    %v1278 = vunpack.c.l.b16 %v955
    %v1279 = vunpack.c.h.b16 %v955
    %v1280 = vunpack.c.l.b16 %v956
    %v1281 = vunpack.c.h.b16 %v956
    %v1282 = vunpack.c.l.b16 %v957
    %v1283 = vunpack.c.h.b16 %v957
    %v1284 = vunpack.c.l.b16 %v958
    %v1285 = vunpack.c.h.b16 %v958
    %v1286 = vunpack.c.l.b16 %v959
    %v1287 = vunpack.c.h.b16 %v959
    %v1288 = vunpack.c.l.b16 %v960
    %v1289 = vunpack.c.h.b16 %v960
    %v1290 = vunpack.c.l.b16 %v961
    %v1291 = vunpack.c.h.b16 %v961
    %v1292 = vunpack.c.l.b16 %v962
    %v1293 = vunpack.c.h.b16 %v962
    %v1294 = vunpack.c.l.b16 %v963
    %v1295 = vunpack.c.h.b16 %v963
    %v1296 = vunpack.c.l.b16 %v964
    %v1297 = vunpack.c.h.b16 %v964
    %v1298 = vunpack.c.l.b16 %v965
    %v1299 = vunpack.c.h.b16 %v965
    %v1300 = vunpack.c.l.b16 %v966
    %v1301 = vunpack.c.h.b16 %v966
    %v1302 = vunpack.c.l.b16 %v967
    %v1303 = vunpack.c.h.b16 %v967
    %v1304 = vunpack.c.l.b16 %v968
    %v1305 = vunpack.c.h.b16 %v968
    %v1306 = vunpack.c.l.b16 %v969
    %v1307 = vunpack.c.h.b16 %v969
    %v1308 = vunpack.c.l.b16 %v970
    %v1309 = vunpack.c.h.b16 %v970
    %v1310 = vunpack.c.l.b16 %v971
    %v1311 = vunpack.c.h.b16 %v971
    %v1312 = vunpack.c.l.b16 %v972
    %v1313 = vunpack.c.h.b16 %v972
    %v1314 = vunpack.c.l.b16 %v973
    %v1315 = vunpack.c.h.b16 %v973
    %v1316 = vunpack.c.l.b16 %v974
    %v1317 = vunpack.c.h.b16 %v974
    %v1318 = vunpack.c.l.b16 %v975
    %v1319 = vunpack.c.h.b16 %v975
    %v1320 = vunpack.c.l.b16 %v976
    %v1321 = vunpack.c.h.b16 %v976
    %v1322 = vunpack.c.l.b16 %v977
    %v1323 = vunpack.c.h.b16 %v977
    %v1324 = vunpack.c.l.b16 %v978
    %v1325 = vunpack.c.h.b16 %v978
    %v1326 = vunpack.c.l.b16 %v979
    %v1327 = vunpack.c.h.b16 %v979
    %v1328 = vunpack.c.l.b16 %v980
    %v1329 = vunpack.c.h.b16 %v980
    %v1330 = vunpack.c.l.b16 %v981
    %v1331 = vunpack.c.h.b16 %v981
    %v1332 = vunpack.c.l.b16 %v982
    %v1333 = vunpack.c.h.b16 %v982
    %v1334 = vunpack.c.l.b16 %v983
    %v1335 = vunpack.c.h.b16 %v983
    %v1336 = vunpack.c.l.b16 %v984
    %v1337 = vunpack.c.h.b16 %v984
    %v1338 = vunpack.c.l.b16 %v985
    %v1339 = vunpack.c.h.b16 %v985
    %v1340 = vunpack.c.l.b16 %v986
    %v1341 = vunpack.c.h.b16 %v986
    %v1342 = vunpack.c.l.b16 %v987
    %v1343 = vunpack.c.h.b16 %v987
    %v1344 = vunpack.c.l.b16 %v988
    %v1345 = vunpack.c.h.b16 %v988
    %v1346 = vunpack.c.l.b16 %v989
    %v1347 = vunpack.c.h.b16 %v989
    %v1348 = vunpack.c.l.b16 %v990
    %v1349 = vunpack.c.h.b16 %v990
    %v1350 = vunpack.c.l.b16 %v991
    %v1351 = vunpack.c.h.b16 %v991
    %v1352 = vunpack.c.l.b16 %v992
    %v1353 = vunpack.c.h.b16 %v992
    %v1354 = vunpack.c.l.b16 %v993
    %v1355 = vunpack.c.h.b16 %v993
    %v1356 = vunpack.c.l.b16 %v994
    %v1357 = vunpack.c.h.b16 %v994
    %v1358 = vunpack.c.l.b16 %v995
    %v1359 = vunpack.c.h.b16 %v995
    %v1360 = vunpack.c.l.b16 %v996
    %v1361 = vunpack.c.h.b16 %v996
    %v1362 = vunpack.c.l.b16 %v997
    %v1363 = vunpack.c.h.b16 %v997
    %v1364 = vunpack.c.l.b16 %v998
    %v1365 = vunpack.c.h.b16 %v998
    %v1366 = vunpack.c.l.b16 %v999
    %v1367 = vunpack.c.h.b16 %v999
    %v1368 = vunpack.c.l.b16 %v1000
    %v1369 = vunpack.c.h.b16 %v1000
    %v1370 = vunpack.c.l.b16 %v1001
    %v1371 = vunpack.c.h.b16 %v1001
    %v1372 = vunpack.c.l.b16 %v1002
    %v1373 = vunpack.c.h.b16 %v1002
    %v1374 = vunpack.c.l.b16 %v1003
    %v1375 = vunpack.c.h.b16 %v1003
    %v1376 = vunpack.c.l.b16 %v1004
    %v1377 = vunpack.c.h.b16 %v1004
    %v1378 = vunpack.c.l.b16 %v1005
    %v1379 = vunpack.c.h.b16 %v1005
    %v1380 = vunpack.c.l.b16 %v1006
    %v1381 = vunpack.c.h.b16 %v1006
    %v1382 = vunpack.c.l.b16 %v1007
    %v1383 = vunpack.c.h.b16 %v1007
    %v1384 = vunpack.c.l.b16 %v1008
    %v1385 = vunpack.c.h.b16 %v1008
    %v1386 = vunpack.c.l.b16 %v1009
    %v1387 = vunpack.c.h.b16 %v1009
    %v1388 = vunpack.c.l.b16 %v1010
    %v1389 = vunpack.c.h.b16 %v1010
    %v1390 = vunpack.c.l.b16 %v1011
    %v1391 = vunpack.c.h.b16 %v1011
    %v1392 = vunpack.c.l.b16 %v1012
    %v1393 = vunpack.c.h.b16 %v1012
    %v1394 = vunpack.c.l.b16 %v1013
    %v1395 = vunpack.c.h.b16 %v1013
    %v1396 = vunpack.c.l.b16 %v1014
    %v1397 = vunpack.c.h.b16 %v1014
    %v1398 = vunpack.c.l.b16 %v1015
    %v1399 = vunpack.c.h.b16 %v1015
    %v1400 = vunpack.c.l.b16 %v1016
    %v1401 = vunpack.c.h.b16 %v1016
    %v1402 = vunpack.c.l.b16 %v1017
    %v1403 = vunpack.c.h.b16 %v1017
    %v1404 = vunpack.c.l.b16 %v1018
    %v1405 = vunpack.c.h.b16 %v1018
    %v1406 = vunpack.c.l.b16 %v1019
    %v1407 = vunpack.c.h.b16 %v1019
    %v1408 = vunpack.c.l.b16 %v1020
    %v1409 = vunpack.c.h.b16 %v1020
    %v1410 = vunpack.c.l.b16 %v1021
    %v1411 = vunpack.c.h.b16 %v1021
    %v1412 = vunpack.c.l.b16 %v1022
    %v1413 = vunpack.c.h.b16 %v1022
    %v1414 = vunpack.c.l.b16 %v1023
    %v1415 = vunpack.c.h.b16 %v1023
    %v1416 = vunpack.c.l.b16 %v1024
    %v1417 = vunpack.c.h.b16 %v1024
    %v1418 = vunpack.c.l.b16 %v1025
    %v1419 = vunpack.c.h.b16 %v1025
    %v1420 = vunpack.c.l.b16 %v1026
    %v1421 = vunpack.c.h.b16 %v1026
    %v1422 = vunpack.c.l.b16 %v1027
    %v1423 = vunpack.c.h.b16 %v1027
    %v1424 = vunpack.c.l.b16 %v1028
    %v1425 = vunpack.c.h.b16 %v1028
    %v1426 = vunpack.c.l.b16 %v1029
    %v1427 = vunpack.c.h.b16 %v1029
    %v1428 = vunpack.c.l.b16 %v1030
    %v1429 = vunpack.c.h.b16 %v1030
    %v1430 = vunpack.c.l.b16 %v1031
    %v1431 = vunpack.c.h.b16 %v1031
    %v1432 = vunpack.c.l.b16 %v1032
    %v1433 = vunpack.c.h.b16 %v1032
    %v1434 = vunpack.c.l.b16 %v1033
    %v1435 = vunpack.c.h.b16 %v1033
    %v1436 = vpack.c.b16 %v1188, %v1180
    %v1437 = vpack.c.b16 %v1189, %v1181
    %v1438 = vpack.c.b16 %v1190, %v1182
    %v1439 = vpack.c.b16 %v1191, %v1183
    %v1440 = vpack.c.b16 %v1192, %v1184
    %v1441 = vpack.c.b16 %v1193, %v1185
    %v1442 = vpack.c.b16 %v1194, %v1186
    %v1443 = vpack.c.b16 %v1195, %v1187
    %v1444 = vpack.c.b16 %v1204, %v1196
    %v1445 = vpack.c.b16 %v1205, %v1197
    %v1446 = vpack.c.b16 %v1206, %v1198
    %v1447 = vpack.c.b16 %v1207, %v1199
    %v1448 = vpack.c.b16 %v1208, %v1200
    %v1449 = vpack.c.b16 %v1209, %v1201
    %v1450 = vpack.c.b16 %v1210, %v1202
    %v1451 = vpack.c.b16 %v1211, %v1203
    %v1452 = vpack.c.b16 %v1220, %v1212
    %v1453 = vpack.c.b16 %v1221, %v1213
    %v1454 = vpack.c.b16 %v1222, %v1214
    %v1455 = vpack.c.b16 %v1223, %v1215
    %v1456 = vpack.c.b16 %v1224, %v1216
    %v1457 = vpack.c.b16 %v1225, %v1217
    %v1458 = vpack.c.b16 %v1226, %v1218
    %v1459 = vpack.c.b16 %v1227, %v1219
    %v1460 = vpack.c.b16 %v1236, %v1228
    %v1461 = vpack.c.b16 %v1237, %v1229
    %v1462 = vpack.c.b16 %v1238, %v1230
    %v1463 = vpack.c.b16 %v1239, %v1231
    %v1464 = vpack.c.b16 %v1240, %v1232
    %v1465 = vpack.c.b16 %v1241, %v1233
    %v1466 = vpack.c.b16 %v1242, %v1234
    %v1467 = vpack.c.b16 %v1243, %v1235
    %v1468 = vpack.c.b16 %v1252, %v1244
    %v1469 = vpack.c.b16 %v1253, %v1245
    %v1470 = vpack.c.b16 %v1254, %v1246
    %v1471 = vpack.c.b16 %v1255, %v1247
    %v1472 = vpack.c.b16 %v1256, %v1248
    %v1473 = vpack.c.b16 %v1257, %v1249
    %v1474 = vpack.c.b16 %v1258, %v1250
    %v1475 = vpack.c.b16 %v1259, %v1251
    %v1476 = vpack.c.b16 %v1268, %v1260
    %v1477 = vpack.c.b16 %v1269, %v1261
    %v1478 = vpack.c.b16 %v1270, %v1262
    %v1479 = vpack.c.b16 %v1271, %v1263
    %v1480 = vpack.c.b16 %v1272, %v1264
    %v1481 = vpack.c.b16 %v1273, %v1265
    %v1482 = vpack.c.b16 %v1274, %v1266
    %v1483 = vpack.c.b16 %v1275, %v1267
    %v1484 = vpack.c.b16 %v1284, %v1276
    %v1485 = vpack.c.b16 %v1285, %v1277
    %v1486 = vpack.c.b16 %v1286, %v1278
    %v1487 = vpack.c.b16 %v1287, %v1279
    %v1488 = vpack.c.b16 %v1288, %v1280
    %v1489 = vpack.c.b16 %v1289, %v1281
    %v1490 = vpack.c.b16 %v1290, %v1282
    %v1491 = vpack.c.b16 %v1291, %v1283
    %v1492 = vpack.c.b16 %v1300, %v1292
    %v1493 = vpack.c.b16 %v1301, %v1293
    %v1494 = vpack.c.b16 %v1302, %v1294
    %v1495 = vpack.c.b16 %v1303, %v1295
    %v1496 = vpack.c.b16 %v1304, %v1296
    %v1497 = vpack.c.b16 %v1305, %v1297
    %v1498 = vpack.c.b16 %v1306, %v1298
    %v1499 = vpack.c.b16 %v1307, %v1299
    %v1500 = vpack.c.b16 %v1316, %v1308
    %v1501 = vpack.c.b16 %v1317, %v1309
    %v1502 = vpack.c.b16 %v1318, %v1310
    %v1503 = vpack.c.b16 %v1319, %v1311
    %v1504 = vpack.c.b16 %v1320, %v1312
    %v1505 = vpack.c.b16 %v1321, %v1313
    %v1506 = vpack.c.b16 %v1322, %v1314
    %v1507 = vpack.c.b16 %v1323, %v1315
    %v1508 = vpack.c.b16 %v1332, %v1324
    %v1509 = vpack.c.b16 %v1333, %v1325
    %v1510 = vpack.c.b16 %v1334, %v1326
    %v1511 = vpack.c.b16 %v1335, %v1327
    %v1512 = vpack.c.b16 %v1336, %v1328
    %v1513 = vpack.c.b16 %v1337, %v1329
    %v1514 = vpack.c.b16 %v1338, %v1330
    %v1515 = vpack.c.b16 %v1339, %v1331
    %v1516 = vpack.c.b16 %v1348, %v1340
    %v1517 = vpack.c.b16 %v1349, %v1341
    %v1518 = vpack.c.b16 %v1350, %v1342
    %v1519 = vpack.c.b16 %v1351, %v1343
    %v1520 = vpack.c.b16 %v1352, %v1344
    %v1521 = vpack.c.b16 %v1353, %v1345
    %v1522 = vpack.c.b16 %v1354, %v1346
    %v1523 = vpack.c.b16 %v1355, %v1347
    %v1524 = vpack.c.b16 %v1364, %v1356
    %v1525 = vpack.c.b16 %v1365, %v1357
    %v1526 = vpack.c.b16 %v1366, %v1358
    %v1527 = vpack.c.b16 %v1367, %v1359
    %v1528 = vpack.c.b16 %v1368, %v1360
    %v1529 = vpack.c.b16 %v1369, %v1361
    %v1530 = vpack.c.b16 %v1370, %v1362
    %v1531 = vpack.c.b16 %v1371, %v1363
    %v1532 = vpack.c.b16 %v1380, %v1372
    %v1533 = vpack.c.b16 %v1381, %v1373
    %v1534 = vpack.c.b16 %v1382, %v1374
    %v1535 = vpack.c.b16 %v1383, %v1375
    %v1536 = vpack.c.b16 %v1384, %v1376
    %v1537 = vpack.c.b16 %v1385, %v1377
    %v1538 = vpack.c.b16 %v1386, %v1378
    %v1539 = vpack.c.b16 %v1387, %v1379
    %v1540 = vpack.c.b16 %v1396, %v1388
    %v1541 = vpack.c.b16 %v1397, %v1389
    %v1542 = vpack.c.b16 %v1398, %v1390
    %v1543 = vpack.c.b16 %v1399, %v1391
    %v1544 = vpack.c.b16 %v1400, %v1392
    %v1545 = vpack.c.b16 %v1401, %v1393
    %v1546 = vpack.c.b16 %v1402, %v1394
    %v1547 = vpack.c.b16 %v1403, %v1395
    %v1548 = vpack.c.b16 %v1412, %v1404
    %v1549 = vpack.c.b16 %v1413, %v1405
    %v1550 = vpack.c.b16 %v1414, %v1406
    %v1551 = vpack.c.b16 %v1415, %v1407
    %v1552 = vpack.c.b16 %v1416, %v1408
    %v1553 = vpack.c.b16 %v1417, %v1409
    %v1554 = vpack.c.b16 %v1418, %v1410
    %v1555 = vpack.c.b16 %v1419, %v1411
    %v1556 = vpack.c.b16 %v1428, %v1420
    %v1557 = vpack.c.b16 %v1429, %v1421
    %v1558 = vpack.c.b16 %v1430, %v1422
    %v1559 = vpack.c.b16 %v1431, %v1423
    %v1560 = vpack.c.b16 %v1432, %v1424
    %v1561 = vpack.c.b16 %v1433, %v1425
    %v1562 = vpack.c.b16 %v1434, %v1426
    %v1563 = vpack.c.b16 %v1435, %v1427
    %1692 = vmatpush.bf16.msra.mxu0 %v1492
    %1693 = vmatpush.bf16.msra.mxu0 %v1484
    %1694 = vmatpush.bf16.msra.mxu0 %v1476
    %1695 = vmatpush.bf16.msra.mxu0 %v1468
    %1696 = vmatpush.bf16.msra.mxu0 %v1460
    %1697 = vmatpush.bf16.msra.mxu0 %v1452
    %1698 = vmatpush.bf16.msra.mxu0 %v1444
    %1699 = vmatpush.bf16.msra.mxu0 %v1436
    %1700 = vmatmul.bf16.gmra.mxu0 %v904
    %v1701 = vpop.f32.mrf.mxu0
    %v1702 = vadd.f32 %v1036, %v1701
    %v1703 = vpop.f32.mrf.mxu0
    %v1704 = vadd.f32 %v1036, %v1703
    %1705 = vdwg.mxu0
    %1706 = vmatpush.bf16.msra.mxu0 %v1556
    %1707 = vmatpush.bf16.msra.mxu0 %v1548
    %1708 = vmatpush.bf16.msra.mxu0 %v1540
    %1709 = vmatpush.bf16.msra.mxu0 %v1532
    %1710 = vmatpush.bf16.msra.mxu0 %v1524
    %1711 = vmatpush.bf16.msra.mxu0 %v1516
    %1712 = vmatpush.bf16.msra.mxu0 %v1508
    %1713 = vmatpush.bf16.msra.mxu0 %v1500
    %1714 = vmatmul.bf16.gmra.mxu0 %v905
    %v1715 = vpop.f32.mrf.mxu0
    %v1716 = vadd.f32 %v1702, %v1715
    %v1717 = vpop.f32.mrf.mxu0
    %v1718 = vadd.f32 %v1704, %v1717
    %1719 = vdwg.mxu0
    %1720 = vmatpush.bf16.msra.mxu0 %v1493
    %1721 = vmatpush.bf16.msra.mxu0 %v1485
    %1722 = vmatpush.bf16.msra.mxu0 %v1477
    %1723 = vmatpush.bf16.msra.mxu0 %v1469
    %1724 = vmatpush.bf16.msra.mxu0 %v1461
    %1725 = vmatpush.bf16.msra.mxu0 %v1453
    %1726 = vmatpush.bf16.msra.mxu0 %v1445
    %1727 = vmatpush.bf16.msra.mxu0 %v1437
    %1728 = vmatmul.bf16.gmra.mxu0 %v904
    %v1729 = vpop.f32.mrf.mxu0
    %v1730 = vadd.f32 %v1037, %v1729
    %v1731 = vpop.f32.mrf.mxu0
    %v1732 = vadd.f32 %v1037, %v1731
    %1733 = vdwg.mxu0
    %1734 = vmatpush.bf16.msra.mxu0 %v1557
    %1735 = vmatpush.bf16.msra.mxu0 %v1549
    %1736 = vmatpush.bf16.msra.mxu0 %v1541
    %1737 = vmatpush.bf16.msra.mxu0 %v1533
    %1738 = vmatpush.bf16.msra.mxu0 %v1525
    %1739 = vmatpush.bf16.msra.mxu0 %v1517
    %1740 = vmatpush.bf16.msra.mxu0 %v1509
    %1741 = vmatpush.bf16.msra.mxu0 %v1501
    %1742 = vmatmul.bf16.gmra.mxu0 %v905
    %v1743 = vpop.f32.mrf.mxu0
    %v1744 = vadd.f32 %v1730, %v1743
    %v1745 = vpop.f32.mrf.mxu0
    %v1746 = vadd.f32 %v1732, %v1745
    %1747 = vdwg.mxu0
    %1748 = vmatpush.bf16.msra.mxu0 %v1494
    %1749 = vmatpush.bf16.msra.mxu0 %v1486
    %1750 = vmatpush.bf16.msra.mxu0 %v1478
    %1751 = vmatpush.bf16.msra.mxu0 %v1470
    %1752 = vmatpush.bf16.msra.mxu0 %v1462
    %1753 = vmatpush.bf16.msra.mxu0 %v1454
    %1754 = vmatpush.bf16.msra.mxu0 %v1446
    %1755 = vmatpush.bf16.msra.mxu0 %v1438
    %1756 = vmatmul.bf16.gmra.mxu0 %v904
    %v1757 = vpop.f32.mrf.mxu0
    %v1758 = vadd.f32 %v1038, %v1757
    %v1759 = vpop.f32.mrf.mxu0
    %v1760 = vadd.f32 %v1038, %v1759
    %1761 = vdwg.mxu0
    %1762 = vmatpush.bf16.msra.mxu0 %v1558
    %1763 = vmatpush.bf16.msra.mxu0 %v1550
    %1764 = vmatpush.bf16.msra.mxu0 %v1542
    %1765 = vmatpush.bf16.msra.mxu0 %v1534
    %1766 = vmatpush.bf16.msra.mxu0 %v1526
    %1767 = vmatpush.bf16.msra.mxu0 %v1518
    %1768 = vmatpush.bf16.msra.mxu0 %v1510
    %1769 = vmatpush.bf16.msra.mxu0 %v1502
    %1770 = vmatmul.bf16.gmra.mxu0 %v905
    %v1771 = vpop.f32.mrf.mxu0
    %v1772 = vadd.f32 %v1758, %v1771
    %v1773 = vpop.f32.mrf.mxu0
    %v1774 = vadd.f32 %v1760, %v1773
    %1775 = vdwg.mxu0
    %1776 = vmatpush.bf16.msra.mxu0 %v1495
    %1777 = vmatpush.bf16.msra.mxu0 %v1487
    %1778 = vmatpush.bf16.msra.mxu0 %v1479
    %1779 = vmatpush.bf16.msra.mxu0 %v1471
    %1780 = vmatpush.bf16.msra.mxu0 %v1463
    %1781 = vmatpush.bf16.msra.mxu0 %v1455
    %1782 = vmatpush.bf16.msra.mxu0 %v1447
    %1783 = vmatpush.bf16.msra.mxu0 %v1439
    %1784 = vmatmul.bf16.gmra.mxu0 %v904
    %v1785 = vpop.f32.mrf.mxu0
    %v1786 = vadd.f32 %v1039, %v1785
    %v1787 = vpop.f32.mrf.mxu0
    %v1788 = vadd.f32 %v1039, %v1787
    %1789 = vdwg.mxu0
    %1790 = vmatpush.bf16.msra.mxu0 %v1559
    %1791 = vmatpush.bf16.msra.mxu0 %v1551
    %1792 = vmatpush.bf16.msra.mxu0 %v1543
    %1793 = vmatpush.bf16.msra.mxu0 %v1535
    %1794 = vmatpush.bf16.msra.mxu0 %v1527
    %1795 = vmatpush.bf16.msra.mxu0 %v1519
    %1796 = vmatpush.bf16.msra.mxu0 %v1511
    %1797 = vmatpush.bf16.msra.mxu0 %v1503
    %1798 = vmatmul.bf16.gmra.mxu0 %v905
    %v1799 = vpop.f32.mrf.mxu0
    %v1800 = vadd.f32 %v1786, %v1799
    %v1801 = vpop.f32.mrf.mxu0
    %v1802 = vadd.f32 %v1788, %v1801
    %1803 = vdwg.mxu0
    %1804 = vmatpush.bf16.msra.mxu0 %v1496
    %1805 = vmatpush.bf16.msra.mxu0 %v1488
    %1806 = vmatpush.bf16.msra.mxu0 %v1480
    %1807 = vmatpush.bf16.msra.mxu0 %v1472
    %1808 = vmatpush.bf16.msra.mxu0 %v1464
    %1809 = vmatpush.bf16.msra.mxu0 %v1456
    %1810 = vmatpush.bf16.msra.mxu0 %v1448
    %1811 = vmatpush.bf16.msra.mxu0 %v1440
    %1812 = vmatmul.bf16.gmra.mxu0 %v904
    %v1813 = vpop.f32.mrf.mxu0
    %v1814 = vadd.f32 %v1040, %v1813
    %v1815 = vpop.f32.mrf.mxu0
    %v1816 = vadd.f32 %v1040, %v1815
    %1817 = vdwg.mxu0
    %1818 = vmatpush.bf16.msra.mxu0 %v1560
    %1819 = vmatpush.bf16.msra.mxu0 %v1552
    %1820 = vmatpush.bf16.msra.mxu0 %v1544
    %1821 = vmatpush.bf16.msra.mxu0 %v1536
    %1822 = vmatpush.bf16.msra.mxu0 %v1528
    %1823 = vmatpush.bf16.msra.mxu0 %v1520
    %1824 = vmatpush.bf16.msra.mxu0 %v1512
    %1825 = vmatpush.bf16.msra.mxu0 %v1504
    %1826 = vmatmul.bf16.gmra.mxu0 %v905
    %v1827 = vpop.f32.mrf.mxu0
    %v1828 = vadd.f32 %v1814, %v1827
    %v1829 = vpop.f32.mrf.mxu0
    %v1830 = vadd.f32 %v1816, %v1829
    %1831 = vdwg.mxu0
    %1832 = vmatpush.bf16.msra.mxu0 %v1497
    %1833 = vmatpush.bf16.msra.mxu0 %v1489
    %1834 = vmatpush.bf16.msra.mxu0 %v1481
    %1835 = vmatpush.bf16.msra.mxu0 %v1473
    %1836 = vmatpush.bf16.msra.mxu0 %v1465
    %1837 = vmatpush.bf16.msra.mxu0 %v1457
    %1838 = vmatpush.bf16.msra.mxu0 %v1449
    %1839 = vmatpush.bf16.msra.mxu0 %v1441
    %1840 = vmatmul.bf16.gmra.mxu0 %v904
    %v1841 = vpop.f32.mrf.mxu0
    %v1842 = vadd.f32 %v1041, %v1841
    %v1843 = vpop.f32.mrf.mxu0
    %v1844 = vadd.f32 %v1041, %v1843
    %1845 = vdwg.mxu0
    %1846 = vmatpush.bf16.msra.mxu0 %v1561
    %1847 = vmatpush.bf16.msra.mxu0 %v1553
    %1848 = vmatpush.bf16.msra.mxu0 %v1545
    %1849 = vmatpush.bf16.msra.mxu0 %v1537
    %1850 = vmatpush.bf16.msra.mxu0 %v1529
    %1851 = vmatpush.bf16.msra.mxu0 %v1521
    %1852 = vmatpush.bf16.msra.mxu0 %v1513
    %1853 = vmatpush.bf16.msra.mxu0 %v1505
    %1854 = vmatmul.bf16.gmra.mxu0 %v905
    %v1855 = vpop.f32.mrf.mxu0
    %v1856 = vadd.f32 %v1842, %v1855
    %v1857 = vpop.f32.mrf.mxu0
    %v1858 = vadd.f32 %v1844, %v1857
    %1859 = vdwg.mxu0
    %1860 = vmatpush.bf16.msra.mxu0 %v1498
    %1861 = vmatpush.bf16.msra.mxu0 %v1490
    %1862 = vmatpush.bf16.msra.mxu0 %v1482
    %1863 = vmatpush.bf16.msra.mxu0 %v1474
    %1864 = vmatpush.bf16.msra.mxu0 %v1466
    %1865 = vmatpush.bf16.msra.mxu0 %v1458
    %1866 = vmatpush.bf16.msra.mxu0 %v1450
    %1867 = vmatpush.bf16.msra.mxu0 %v1442
    %1868 = vmatmul.bf16.gmra.mxu0 %v904
    %v1869 = vpop.f32.mrf.mxu0
    %v1870 = vadd.f32 %v1042, %v1869
    %v1871 = vpop.f32.mrf.mxu0
    %v1872 = vadd.f32 %v1042, %v1871
    %1873 = vdwg.mxu0
    %1874 = vmatpush.bf16.msra.mxu0 %v1562
    %1875 = vmatpush.bf16.msra.mxu0 %v1554
    %1876 = vmatpush.bf16.msra.mxu0 %v1546
    %1877 = vmatpush.bf16.msra.mxu0 %v1538
    %1878 = vmatpush.bf16.msra.mxu0 %v1530
    %1879 = vmatpush.bf16.msra.mxu0 %v1522
    %1880 = vmatpush.bf16.msra.mxu0 %v1514
    %1881 = vmatpush.bf16.msra.mxu0 %v1506
    %1882 = vmatmul.bf16.gmra.mxu0 %v905
    %v1883 = vpop.f32.mrf.mxu0
    %v1884 = vadd.f32 %v1870, %v1883
    %v1885 = vpop.f32.mrf.mxu0
    %v1886 = vadd.f32 %v1872, %v1885
    %1887 = vdwg.mxu0
    %1888 = vmatpush.bf16.msra.mxu0 %v1499
    %1889 = vmatpush.bf16.msra.mxu0 %v1491
    %1890 = vmatpush.bf16.msra.mxu0 %v1483
    %1891 = vmatpush.bf16.msra.mxu0 %v1475
    %1892 = vmatpush.bf16.msra.mxu0 %v1467
    %1893 = vmatpush.bf16.msra.mxu0 %v1459
    %1894 = vmatpush.bf16.msra.mxu0 %v1451
    %1895 = vmatpush.bf16.msra.mxu0 %v1443
    %1896 = vmatmul.bf16.gmra.mxu0 %v904
    %v1897 = vpop.f32.mrf.mxu0
    %v1898 = vadd.f32 %v1043, %v1897
    %v1899 = vpop.f32.mrf.mxu0
    %v1900 = vadd.f32 %v1043, %v1899
    %1901 = vdwg.mxu0
    %1902 = vmatpush.bf16.msra.mxu0 %v1563
    %1903 = vmatpush.bf16.msra.mxu0 %v1555
    %1904 = vmatpush.bf16.msra.mxu0 %v1547
    %1905 = vmatpush.bf16.msra.mxu0 %v1539
    %1906 = vmatpush.bf16.msra.mxu0 %v1531
    %1907 = vmatpush.bf16.msra.mxu0 %v1523
    %1908 = vmatpush.bf16.msra.mxu0 %v1515
    %1909 = vmatpush.bf16.msra.mxu0 %v1507
    %1910 = vmatmul.bf16.gmra.mxu0 %v905
    %v1911 = vpop.f32.mrf.mxu0
    %v1912 = vadd.f32 %v1898, %v1911
    %v1913 = vpop.f32.mrf.mxu0
    %v1914 = vadd.f32 %v1900, %v1913
    %1915 = vdwg.mxu0
    %v1916 = vtanh.pop %v1716
    %v1917 = vtanh.pop %v1744
    %v1918 = vtanh.pop %v1772
    %v1919 = vtanh.pop %v1800
    %v1920 = vtanh.pop %v1828
    %v1921 = vtanh.pop %v1856
    %v1922 = vtanh.pop %v1884
    %v1923 = vtanh.pop %v1912
    %v1924 = vtanh.pop %v1718
    %v1925 = vtanh.pop %v1746
    %v1926 = vtanh.pop %v1774
    %v1927 = vtanh.pop %v1802
    %v1928 = vtanh.pop %v1830
    %v1929 = vtanh.pop %v1858
    %v1930 = vtanh.pop %v1886
    %v1931 = vtanh.pop %v1914
    %1932 = vst [vmem:[%s9] sm:$0xff] %v1916
    %1933 = vst [vmem:[%s9 + $0x8] sm:$0xff] %v1917
    %1934 = vst [vmem:[%s9 + $0x10] sm:$0xff] %v1918
    %1935 = vst [vmem:[%s9 + $0x18] sm:$0xff] %v1919
    %1936 = vst [vmem:[%s9 + $0x20] sm:$0xff] %v1920
    %1937 = vst [vmem:[%s9 + $0x28] sm:$0xff] %v1921
    %1938 = vst [vmem:[%s9 + $0x30] sm:$0xff] %v1922
    %1939 = vst [vmem:[%s9 + $0x38] sm:$0xff] %v1923
    %1940 = vst [vmem:[%s9 + $0x40] sm:$0xff] %v1924
    %1941 = vst [vmem:[%s9 + $0x48] sm:$0xff] %v1925
    %1942 = vst [vmem:[%s9 + $0x50] sm:$0xff] %v1926
    %1943 = vst [vmem:[%s9 + $0x58] sm:$0xff] %v1927
    %1944 = vst [vmem:[%s9 + $0x60] sm:$0xff] %v1928
    %1945 = vst [vmem:[%s9 + $0x68] sm:$0xff] %v1929
    %1946 = vst [vmem:[%s9 + $0x70] sm:$0xff] %v1930
    %1947 = vst [vmem:[%s9 + $0x78] sm:$0xff] %v1931
    // Predicated region
    $region46: #{modspace_autoencoder_forward.1} parent=1 // pred_check
      _
    $region47: #{modspace_autoencoder_forward.1} parent=1 // pred_check_branch
      %1949 = sbr.rel (0) target = $region49
    $region48: #{modspace_autoencoder_forward.1} parent=1 // pred_region
      _
    $region49: #{modspace_autoencoder_forward.1} parent=1 // pred_fallthru
      _
    // Predicated region
    $region50: #{modspace_autoencoder_forward.1} parent=1 // pred_check
      _
    $region51: #{modspace_autoencoder_forward.1} parent=1 // pred_check_branch
      %1951 = sbr.rel (0) target = $region53
    $region52: #{modspace_autoencoder_forward.1} parent=1 // pred_region
      _
    $region53: #{modspace_autoencoder_forward.1} parent=1 // pred_fallthru
      _
    // Predicated region
    $region54: #{modspace_autoencoder_forward.1} parent=1 // pred_check
      _
    $region55: #{modspace_autoencoder_forward.1} parent=1 // pred_check_branch
      %1953 = sbr.rel (0) target = $region57
    $region56: #{modspace_autoencoder_forward.1} parent=1 // pred_region
      _
    $region57: #{modspace_autoencoder_forward.1} parent=1 // pred_fallthru
      _
    // Predicated region
    $region58: #{modspace_autoencoder_forward.1} parent=1 // pred_check
      _
    $region59: #{modspace_autoencoder_forward.1} parent=1 // pred_check_branch
      %1955 = sbr.rel (0) target = $region61
    $region60: #{modspace_autoencoder_forward.1} parent=1 // pred_region
      _
    $region61: #{modspace_autoencoder_forward.1} parent=1 // pred_fallthru
      _
    %1956 = vsyncpa [#allocation3], 1
    %1957 = vsyncpa [#allocation5], 1

</llo_original>
